<compile_context>
chip_gen: v7x
topology: tpu7x:2x2x1
jax: 0.10.0
libtpu: 0.0.40
codegen_flags: <defaults>
</compile_context>

<pallas_src>
import jax
import jax.numpy as jnp
from jax.experimental import pallas as pl
from jax.experimental.pallas import tpu as pltpu


def _round_up(a: int, b: int) -> int:
    return (a + b - 1) // b * b


def _fused_gram_kernel(kp1, tm, m_total, tiles_per_split, compute_dtype,
                       need_mask):
    """One grid step: accumulate X_tile^T @ [X_tile*pi_0 | ... | X_tile*pi_k]."""

    def kernel(x_ref, pi_ref, out_ref):
        @pl.when(pl.program_id(1) == 0)
        def _init():
            out_ref[...] = jnp.zeros_like(out_ref)

        x = x_ref[...]                       # (tm, p)   mxu dtype (bf16/f32)
        pi = pi_ref[...]                     # (tm, kp1) f32

        if need_mask:
            # Tail tile (m % tm != 0) or duplicated/empty tile from the
            # core-split remainder: zero out rows past the valid sample count.
            t = pl.program_id(0) * tiles_per_split + pl.program_id(1)
            valid = m_total - t * tm         # scalar; <= 0 => fully masked
            row_ok = jax.lax.broadcasted_iota(jnp.int32, (tm, 1), 0) < valid
            x = jnp.where(row_ok, x, jnp.zeros_like(x))
            pi = jnp.where(row_ok, pi, jnp.zeros_like(pi))

        xf = x.astype(jnp.float32)
        # Stack the k+1 weighted copies along the lane axis (each piece is a
        # full 128-lane multiple -> pure vreg placement, no data shuffles).
        xw_all = jnp.concatenate(
            [(xf * pi[:, j:j + 1]).astype(compute_dtype) for j in range(kp1)],
            axis=1)                          # (tm, (k+1)*p)

        # Single MXU matmul contracting the sample (sublane) dim of both
        # operands; f32 accumulation into the resident output block.
        out_ref[0, :, :] += jax.lax.dot_general(
            x.astype(compute_dtype), xw_all, (((0,), (0,)), ((), ())),
            preferred_element_type=jnp.float32)

    return kernel


def weighted_grams_pallas(x, pi_ext, *, tile_m=2048, mxu_dtype=jnp.bfloat16,
                          num_core_splits=2):
    """grams[j] = X^T diag(pi_ext[j]) X for all j, in one Pallas kernel.

    x:      (m, p)      features (rows = samples)
    pi_ext: (k + 1, m)  per-class sample weights (row 0 = all ones)
    returns (k + 1, p, p) float32
    """
    m, p = x.shape
    kp1 = pi_ext.shape[0]

    # DMA X at MXU-input width (bf16 halves HBM traffic and X-tile VMEM while
    # keeping f32 accumulation; pass mxu_dtype=jnp.float32 for exact-ish f32).
    x = x.astype(mxu_dtype)
    pi_t = pi_ext.astype(jnp.float32).T          # (m, kp1): lane = class dim

    # Sample tile: multiple of 8 (f32/bf16 sublane constraint satisfied), big
    # enough to amortize ~0.35us/step overhead + the accumulator RMW.
    tm = min(_round_up(tile_m, 8), _round_up(m, 8))
    n_tiles = pl.cdiv(m, tm)
    num_splits = max(1, min(num_core_splits, n_tiles))
    tiles_per_split = pl.cdiv(n_tiles, num_splits)
    need_mask = (m % tm != 0) or (num_splits * tiles_per_split != n_tiles)

    def in_map(s, i):
        # Clamp so the block index never runs past the last real tile; the
        # in-kernel mask zeroes any duplicated/partial rows.
        return (jnp.minimum(s * tiles_per_split + i, n_tiles - 1), 0)

    grid_spec = pltpu.PrefetchScalarGridSpec(
        num_scalar_prefetch=0,
        grid=(num_splits, tiles_per_split),
        in_specs=[
            pl.BlockSpec((tm, p), in_map),       # X tile (pipelined)
            pl.BlockSpec((tm, kp1), in_map),     # Pi tile (pipelined)
        ],
        # Per-split partial accumulator stays VMEM-resident across the inner
        # (reduction) axis; written back once per split.
        out_specs=pl.BlockSpec((1, p, kp1 * p), lambda s, i: (s, 0, 0)),
    )
    fused = pl.pallas_call(
        _fused_gram_kernel(kp1, tm, m, tiles_per_split, mxu_dtype, need_mask),
        grid_spec=grid_spec,
        out_shape=jax.ShapeDtypeStruct((num_splits, p, kp1 * p), jnp.float32),
        compiler_params=pltpu.CompilerParams(
            # split axis shards across TensorCores (v7x); inner axis is the
            # sample-tile reduction.
            dimension_semantics=("parallel", "arbitrary"),
            # footprint ~6 MiB at tile_m=2048, p=128, k+1=5; 48 MiB leaves
            # headroom for larger tiles while staying inside v7x's 64 MiB.
            vmem_limit_bytes=48 * 1024 * 1024,
        ),
    )(x, pi_t)

    fused = jnp.sum(fused, axis=0)               # (p, (k+1)*p)
    return jnp.transpose(fused.reshape(p, kp1, p), (1, 0, 2))  # (k+1, p, p)


class MaximalCodingRateReduction:
    """JAX / Pallas port of the PyTorch MaximalCodingRateReduction module."""

    def __init__(self, eps=0.01, gamma=1.0, *, tile_m=2048,
                 mxu_dtype=jnp.bfloat16, num_core_splits=2):
        self.eps = float(eps)
        self.gamma = float(gamma)
        self.tile_m = tile_m
        # bf16 MXU inputs with f32 accumulation is the fast native path on
        # v5e/v6e/v7x (f32 matmul is emulated, 3-6x slower).  The Gram is
        # perturbed at ~1e-3 relative level; pass mxu_dtype=jnp.float32 for a
        # closer-to-reference (but much slower) path.
        self.mxu_dtype = mxu_dtype
        self.num_core_splits = num_core_splits

    def __call__(self, X, Y, num_classes=None):
        X = jnp.asarray(X)
        m, p = X.shape                       # torch: W = X.T has shape (p, m)

        if Y.ndim == 1:
            if num_classes is None:
                # NOTE: requires concrete Y (host sync); pass num_classes
                # explicitly when calling under jit.
                num_classes = int(jnp.max(Y)) + 1
            Pi = jax.nn.one_hot(Y, num_classes, dtype=jnp.float32).T  # (k, m)
        else:
            if num_classes is None:
                num_classes = Y.shape[1]
            Pi = jnp.asarray(Y, jnp.float32).T.reshape(num_classes, -1)

        # row 0 = ones (discriminative Gram), rows 1..k = class memberships.
        pi_ext = jnp.concatenate([jnp.ones((1, m), jnp.float32), Pi], axis=0)

        grams = weighted_grams_pallas(
            X, pi_ext, tile_m=self.tile_m, mxu_dtype=self.mxu_dtype,
            num_core_splits=self.num_core_splits)

        eye = jnp.eye(p, dtype=jnp.float32)

        # Discriminative term:  logdet(I + p/(m*eps) * X^T X) / 2
        scalar = p / (m * self.eps)
        discrimn_loss = 0.5 * jnp.linalg.slogdet(eye + scalar * grams[0])[1]

        # Compressive term per class.
        tr_pi = jnp.sum(Pi, axis=1) + 1e-8                    # (k,)
        scale = (p / (tr_pi * self.eps))[:, None, None]       # (k, 1, 1)
        log_det = jnp.linalg.slogdet(eye[None, :, :] + scale * grams[1:])[1]
        compress_loss = jnp.sum(tr_pi * log_det / (2.0 * m))

        total_loss = -discrimn_loss + self.gamma * compress_loss
        return total_loss, [discrimn_loss, compress_loss]


if __name__ == "__main__":
    key = jax.random.PRNGKey(0)
    kx, ky = jax.random.split(key)

    m, p, k = 384, 128, 4       # samples, feature dim (lane-dense), classes
    X = jax.random.normal(kx, (m, p), dtype=jnp.float32)
    Y = jax.random.randint(ky, (m,), 0, k)

    # tile_m=128 -> 3 sample tiles split across the 2-way parallel axis (2x2
    # grid, one fully-masked tail tile): exercises the fused wide matmul, the
    # resident partial accumulators and the in-kernel mask at a small size.
    mcr = MaximalCodingRateReduction(eps=0.01, gamma=1.0, tile_m=128)
    total_loss, (discrimn_loss, compress_loss) = mcr(X, Y, num_classes=k)
    jax.block_until_ready(total_loss)

    # Pure-JAX f32 reference (highest matmul precision); loose tolerance since
    # the kernel feeds the MXU in bf16 with f32 accumulation.
    Pi = jax.nn.one_hot(Y, k, dtype=jnp.float32).T
    eye = jnp.eye(p, dtype=jnp.float32)
    hi = jax.lax.Precision.HIGHEST
    g0 = jnp.einsum("mp,mq->pq", X, X, precision=hi)
    d_ref = 0.5 * jnp.linalg.slogdet(eye + (p / (m * 0.01)) * g0)[1]
    gj = jnp.einsum("mp,km,mq->kpq", X, Pi, X, precision=hi)
    tr = Pi.sum(1) + 1e-8
    ld = jnp.linalg.slogdet(eye[None] + (p / (tr * 0.01))[:, None, None] * gj)[1]
    c_ref = jnp.sum(tr * ld / (2.0 * m))
    t_ref = -d_ref + 1.0 * c_ref

    def close(a, b):
        return abs(float(a) - float(b)) <= 0.05 * abs(float(b)) + 5.0

    assert bool(jnp.isfinite(total_loss))
    assert close(discrimn_loss, d_ref)
    assert close(compress_loss, c_ref)
    assert close(total_loss, t_ref)
    print("KERNEL_OK")
</pallas_src>

<mosaic_0001>
module attributes {stable_mosaic.version = 11 : i64} {
  func.func @kernel(%arg0: i32, %arg1: i32, %arg2: memref<128x128xbf16, #tpu.memory_space<vmem>>, %arg3: memref<128x5xf32, #tpu.memory_space<vmem>>, %arg4: memref<1x128x640xf32, #tpu.memory_space<vmem>>) attributes {dimension_semantics = [#tpu.dimension_semantics<parallel>, #tpu.dimension_semantics<arbitrary>], iteration_bounds = array<i64: 2, 2>, scalar_prefetch = 0 : i64, scratch_operands = 0 : i64, tpu.core_type = #tpu.core_type<tc>, window_params = [{transform_indices = @transform_0, window_bounds = array<i64: 128, 128>}, {transform_indices = @transform_1, window_bounds = array<i64: 128, 5>}, {transform_indices = @transform_2, window_bounds = array<i64: 1, 128, 640>}]} {
    %c0_i32 = arith.constant 0 : i32
    %0 = arith.cmpi eq, %arg1, %c0_i32 : i32
    %1 = arith.extui %0 : i1 to i32
    %c0_i32_0 = arith.constant 0 : i32
    %2 = arith.cmpi ne, %1, %c0_i32_0 : i32
    scf.if %2 {
      %cst_12 = arith.constant 0.000000e+00 : f32
      %49 = vector.broadcast %cst_12 : f32 to vector<1x128x640xf32>
      %c0_13 = arith.constant 0 : index
      %c0_14 = arith.constant 0 : index
      %c0_15 = arith.constant 0 : index
      %50 = vector.load %arg4[%c0_13, %c0_14, %c0_15] : memref<1x128x640xf32, #tpu.memory_space<vmem>>, vector<1x128x640xf32>
      tpu.vector_store %arg4[%c0_13, %c0_14, %c0_15], %49 {strides = array<i32>} : memref<1x128x640xf32, #tpu.memory_space<vmem>>, vector<1x128x640xf32>,
    } else {
    }
    %c0 = arith.constant 0 : index
    %c0_1 = arith.constant 0 : index
    %3 = vector.load %arg2[%c0, %c0_1] : memref<128x128xbf16, #tpu.memory_space<vmem>>, vector<128x128xbf16>
    %c0_2 = arith.constant 0 : index
    %c0_3 = arith.constant 0 : index
    %4 = vector.load %arg3[%c0_2, %c0_3] : memref<128x5xf32, #tpu.memory_space<vmem>>, vector<128x5xf32>
    %c2_i32 = arith.constant 2 : i32
    %5 = arith.muli %arg0, %c2_i32 : i32
    %6 = arith.addi %5, %arg1 : i32
    %c128_i32 = arith.constant 128 : i32
    %7 = arith.muli %6, %c128_i32 : i32
    %c384_i32 = arith.constant 384 : i32
    %8 = arith.subi %c384_i32, %7 : i32
    %9 = tpu.iota {dimensions = array<i32: 0>} : vector<128x1xi32>
    %10 = vector.broadcast %8 : i32 to vector<128x1xi32>
    %11 = arith.cmpi slt, %9, %10 : vector<128x1xi32>
    %cst = arith.constant 0.000000e+00 : bf16
    %12 = vector.broadcast %cst : bf16 to vector<128x128xbf16>
    %13 = vector.shape_cast %11 : vector<128x1xi1> to vector<128x1xi1>
    %14 = vector.broadcast %13 : vector<128x1xi1> to vector<128x128xi1>
    %15 = arith.select %14, %3, %12 : vector<128x128xi1>, vector<128x128xbf16>
    %cst_4 = arith.constant 0.000000e+00 : f32
    %16 = vector.broadcast %cst_4 : f32 to vector<128x5xf32>
    %17 = vector.shape_cast %11 : vector<128x1xi1> to vector<128x1xi1>
    %18 = vector.broadcast %17 : vector<128x1xi1> to vector<128x5xi1>
    %19 = arith.select %18, %4, %16 : vector<128x5xi1>, vector<128x5xf32>
    %20 = arith.extf %15 : vector<128x128xbf16> to vector<128x128xf32>
    %21 = vector.extract_strided_slice %19 {offsets = [0, 0], sizes = [128, 1], strides = [1, 1]} : vector<128x5xf32> to vector<128x1xf32>
    %22 = vector.broadcast %21 : vector<128x1xf32> to vector<128x128xf32>
    %23 = arith.mulf %20, %22 : vector<128x128xf32>
    %24 = arith.truncf %23 : vector<128x128xf32> to vector<128x128xbf16>
    %25 = vector.extract_strided_slice %19 {offsets = [0, 1], sizes = [128, 1], strides = [1, 1]} : vector<128x5xf32> to vector<128x1xf32>
    %26 = vector.broadcast %25 : vector<128x1xf32> to vector<128x128xf32>
    %27 = arith.mulf %20, %26 : vector<128x128xf32>
    %28 = arith.truncf %27 : vector<128x128xf32> to vector<128x128xbf16>
    %29 = vector.extract_strided_slice %19 {offsets = [0, 2], sizes = [128, 1], strides = [1, 1]} : vector<128x5xf32> to vector<128x1xf32>
    %30 = vector.broadcast %29 : vector<128x1xf32> to vector<128x128xf32>
    %31 = arith.mulf %20, %30 : vector<128x128xf32>
    %32 = arith.truncf %31 : vector<128x128xf32> to vector<128x128xbf16>
    %33 = vector.extract_strided_slice %19 {offsets = [0, 3], sizes = [128, 1], strides = [1, 1]} : vector<128x5xf32> to vector<128x1xf32>
    %34 = vector.broadcast %33 : vector<128x1xf32> to vector<128x128xf32>
    %35 = arith.mulf %20, %34 : vector<128x128xf32>
    %36 = arith.truncf %35 : vector<128x128xf32> to vector<128x128xbf16>
    %37 = vector.extract_strided_slice %19 {offsets = [0, 4], sizes = [128, 1], strides = [1, 1]} : vector<128x5xf32> to vector<128x1xf32>
    %38 = vector.broadcast %37 : vector<128x1xf32> to vector<128x128xf32>
    %39 = arith.mulf %20, %38 : vector<128x128xf32>
    %40 = arith.truncf %39 : vector<128x128xf32> to vector<128x128xbf16>
    %41 = tpu.concatenate %24, %28, %32, %36, %40 in 1 : vector<128x128xbf16>, vector<128x128xbf16>, vector<128x128xbf16>, vector<128x128xbf16>, vector<128x128xbf16> -> vector<128x640xbf16>
    %c0_5 = arith.constant 0 : index
    %c0_6 = arith.constant 0 : index
    %c0_7 = arith.constant 0 : index
    %42 = vector.load %arg4[%c0_5, %c0_6, %c0_7] : memref<1x128x640xf32, #tpu.memory_space<vmem>>, vector<1x128x640xf32>
    %43 = vector.shape_cast %42 : vector<1x128x640xf32> to vector<128x640xf32>
    %cst_8 = arith.constant dense<0.000000e+00> : vector<128x640xf32>
    %44 = tpu.matmul %15, %41, %cst_8 {dimension_numbers = #tpu.dot_dimension_numbers<[0], [0], [1], [1], [0, 1, 1, 1], [], []>} : vector<128x128xbf16>, vector<128x640xbf16>, vector<128x640xf32> -> vector<128x640xf32>
    %45 = arith.addf %43, %44 : vector<128x640xf32>
    %c0_9 = arith.constant 0 : index
    %c0_10 = arith.constant 0 : index
    %c0_11 = arith.constant 0 : index
    %46 = vector.load %arg4[%c0_9, %c0_10, %c0_11] : memref<1x128x640xf32, #tpu.memory_space<vmem>>, vector<1x128x640xf32>
    %47 = vector.shape_cast %46 : vector<1x128x640xf32> to vector<128x640xf32>
    %48 = vector.shape_cast %45 : vector<128x640xf32> to vector<1x128x640xf32>
    tpu.vector_store %arg4[%c0_9, %c0_10, %c0_11], %48 {strides = array<i32>} : memref<1x128x640xf32, #tpu.memory_space<vmem>>, vector<1x128x640xf32>,
    return
  }
  func.func @transform_0(%arg0: i32, %arg1: i32) -> (i32, i32) {
    %c2_i32 = arith.constant 2 : i32
    %0 = arith.muli %arg0, %c2_i32 : i32
    %1 = arith.addi %0, %arg1 : i32
    %c2_i32_0 = arith.constant 2 : i32
    %2 = arith.minsi %1, %c2_i32_0 : i32
    %c0_i32 = arith.constant 0 : i32
    %c0_i32_1 = arith.constant 0 : i32
    return %2, %c0_i32 : i32, i32
  }
  func.func @transform_1(%arg0: i32, %arg1: i32) -> (i32, i32) {
    %c2_i32 = arith.constant 2 : i32
    %0 = arith.muli %arg0, %c2_i32 : i32
    %1 = arith.addi %0, %arg1 : i32
    %c2_i32_0 = arith.constant 2 : i32
    %2 = arith.minsi %1, %c2_i32_0 : i32
    %c0_i32 = arith.constant 0 : i32
    %c0_i32_1 = arith.constant 0 : i32
    return %2, %c0_i32 : i32, i32
  }
  func.func @transform_2(%arg0: i32, %arg1: i32) -> (i32, i32, i32) {
    %c0_i32 = arith.constant 0 : i32
    %c0_i32_0 = arith.constant 0 : i32
    %c0_i32_1 = arith.constant 0 : i32
    return %arg0, %c0_i32, %c0_i32_0 : i32, i32, i32
  }
}

</mosaic_0001>

<llo_original>
// kernel: tpu_custom_call.1
$region0: #{tpu_custom_call.1}
  #allocation0 [shape = 'u32[]', space=smem, size = 0x4, offset = 0x4, fixed_abs, tag = 'smem constant byte address 0x4 - core index']
  #allocation1 [shape = 'u32[144,128]{1,0:T(1,128)}', space=vmem, size = 0x12000, scoped, tag = 'internal scratch']
  %s0 = inlined_call_operand.vmem [shape: bf16[384,128], index: 0, kind: input, shape index: {}]
  %s1 = inlined_call_operand.vmem [shape: f32[384,5], index: 1, kind: input, shape index: {}]
  %s2 = inlined_call_operand.hbm [shape: f32[2,128,640], index: 2, kind: output, shape index: {}]
  %s3 = sld [smem:[#allocation0]]
  $region45: #{tpu_custom_call.1} parent=0
    _
  %s5 = ssub.s32 1, %s3
  %s6 = scalar_select 0, %s5, %s3
  $region1: #{tpu_custom_call.1} parent=0
    #allocation2 [shape = 'u8[655360]{0}', space=vmem, size = 0xa0000, scoped, tag = 'output window, operand 0']
    #allocation3 [shape = 's32[2]{0}', space=sflag, size = 0x8, scoped, tag = 'scoped memory for tpu_custom_call.1']
    %7 = vsyncpa [#allocation3], 0
    %s8 = scalar_lea.sflag [#allocation3], 1
    %9 = vsyncpa %s8, 0
    loop: start=0, step=1, limit=6
    $region2: #{tpu_custom_call.1} parent=1 // loop_pre_header
      _
    $region3: #{tpu_custom_call.1} parent=1 // loop_header
      %s11 = sphi 0, %s15
      %p12 = scmp.ge.s32.totalorder %s11, 6
      %s18 = sphi 0, %s30
      %s19 = sphi 0, %s26
      %s20 = sphi 0, %s18
      %s21 = sphi 0, %s19
      %s22 = sphi 0, %s20
      %s23 = sphi 0, %s21
      %s41 = sphi 0, %s43
      %s44 = sphi 0, %s41
      %s45 = sphi 0, %s44
      %s61 = sphi 0, %s45
      %s75 = sphi 0, %s77
      %s78 = sphi 0, %s75
      %s79 = sphi 0, %s78
      %s95 = sphi 0, %s79
      %s101 = sphi 0, %s103
      %s104 = sphi 0, %s101
      %s105 = sphi 0, %s104
      %s121 = sphi 0, %s105
    $region4: #{tpu_custom_call.1} parent=1 // loop_header_branch
      %14 = sbr.rel (%p12) target = $region8
    $region5: #{tpu_custom_call.1} parent=1 // loop_body
      %s16 = ssub.s32 %s11, 1
      %s17 = ssub.s32 %s11, 2
      %s24 = sadd.s32 1, %s19
      %p25 = scmp.ge.s32.totalorder %s24, 2
      %s26 = scalar_select %p25, 0, %s24
      %s27 = sadd.s32 1, %s18
      %s28 = scalar_select %p25, %s27, %s18
      %p29 = scmp.ge.s32.totalorder %s28, 2
      %s30 = scalar_select %p29, 0, %s28
      %s31 = smul.u32 %s18, 2
      %s32 = sadd.s32 %s31, %s19
      %p33 = scmp.lt.s32.totalorder %s32, 2
      %s34 = scalar_select %p33, %s32, 2
      %s35 = smul.u32 %s30, 2
      %s36 = sadd.s32 %s35, %s26
      %p37 = scmp.lt.s32.totalorder %s36, 2
      %s38 = scalar_select %p37, %s36, 2
      %s39 = ssub.s32 %s34, %s38
      %p40 = scmp.eq.s32.totalorder %s39, 0
      %s42 = sadd.s32 %s41, 1
      %s43 = scalar_select %p40, %s41, %s42
      %p46 = pneg %p40
      %p47 = scmp.eq.s32.totalorder %s11, 3
      %p48 = por %p46, %p47
      %p49 = scmp.ne.s32.totalorder %s41, %s44
      %p50 = scmp.eq.s32.totalorder %s11, 0
      %p51 = por %p49, %p50
      %p52 = scmp.ne.s32.totalorder %s41, %s44
      %p53 = scmp.eq.s32.totalorder %s16, 3
      %p54 = por %p52, %p53
      %p55 = scmp.ne.s32.totalorder %s44, %s45
      %p56 = scmp.eq.s32.totalorder %s16, 0
      %p57 = por %p55, %p56
      %p58 = scmp.ne.s32.totalorder %s44, %s45
      %p59 = scmp.eq.s32.totalorder %s17, 3
      %p60 = por %p58, %p59
      %p62 = scmp.ne.s32.totalorder %s45, %s61
      %p63 = scmp.eq.s32.totalorder %s17, 0
      %p64 = por %p62, %p63
      %s65 = smul.u32 %s18, 2
      %s66 = sadd.s32 %s65, %s19
      %p67 = scmp.lt.s32.totalorder %s66, 2
      %s68 = scalar_select %p67, %s66, 2
      %s69 = smul.u32 %s30, 2
      %s70 = sadd.s32 %s69, %s26
      %p71 = scmp.lt.s32.totalorder %s70, 2
      %s72 = scalar_select %p71, %s70, 2
      %s73 = ssub.s32 %s68, %s72
      %p74 = scmp.eq.s32.totalorder %s73, 0
      %s76 = sadd.s32 %s75, 1
      %s77 = scalar_select %p74, %s75, %s76
      %p80 = pneg %p74
      %p81 = scmp.eq.s32.totalorder %s11, 3
      %p82 = por %p80, %p81
      %p83 = scmp.ne.s32.totalorder %s75, %s78
      %p84 = scmp.eq.s32.totalorder %s11, 0
      %p85 = por %p83, %p84
      %p86 = scmp.ne.s32.totalorder %s75, %s78
      %p87 = scmp.eq.s32.totalorder %s16, 3
      %p88 = por %p86, %p87
      %p89 = scmp.ne.s32.totalorder %s78, %s79
      %p90 = scmp.eq.s32.totalorder %s16, 0
      %p91 = por %p89, %p90
      %p92 = scmp.ne.s32.totalorder %s78, %s79
      %p93 = scmp.eq.s32.totalorder %s17, 3
      %p94 = por %p92, %p93
      %p96 = scmp.ne.s32.totalorder %s79, %s95
      %p97 = scmp.eq.s32.totalorder %s17, 0
      %p98 = por %p96, %p97
      %s99 = ssub.s32 %s18, %s30
      %p100 = scmp.eq.s32.totalorder %s99, 0
      %s102 = sadd.s32 %s101, 1
      %s103 = scalar_select %p100, %s101, %s102
      %p106 = pneg %p100
      %p107 = scmp.eq.s32.totalorder %s11, 3
      %p108 = por %p106, %p107
      %p109 = scmp.ne.s32.totalorder %s101, %s104
      %p110 = scmp.eq.s32.totalorder %s11, 0
      %p111 = por %p109, %p110
      %p112 = scmp.ne.s32.totalorder %s101, %s104
      %p113 = scmp.eq.s32.totalorder %s16, 3
      %p114 = por %p112, %p113
      %p115 = scmp.ne.s32.totalorder %s104, %s105
      %p116 = scmp.eq.s32.totalorder %s16, 0
      %p117 = por %p115, %p116
      %p118 = scmp.ne.s32.totalorder %s104, %s105
      %p119 = scmp.eq.s32.totalorder %s17, 3
      %p120 = por %p118, %p119
      %p122 = scmp.ne.s32.totalorder %s105, %s121
      %p123 = scmp.eq.s32.totalorder %s17, 0
      %p124 = por %p122, %p123
      %p125 = scmp.le.s32.totalorder 1, %s11
      %p126 = scmp.lt.s32.totalorder %s11, 5
      %p127 = pnand %p125, %p126
      %p128 = pneg %p127
      // Predicated region
      $region9: #{tpu_custom_call.1} parent=5 // pred_check
        _
      $region10: #{tpu_custom_call.1} parent=5 // pred_check_branch
        %130 = sbr.rel (%p127) target = $region12
      $region11: #{tpu_custom_call.1} parent=5 // pred_region
        %s131 = ssub.s32 %s11, 1
      $region12: #{tpu_custom_call.1} parent=5 // pred_fallthru
        _
      %p132 = scmp.lt.s32.totalorder %s11, 4
      // Predicated region
      $region13: #{tpu_custom_call.1} parent=5 // pred_check
        %p133 = pneg %p132
      $region14: #{tpu_custom_call.1} parent=5 // pred_check_branch
        %135 = sbr.rel (%p133) target = $region16
      $region15: #{tpu_custom_call.1} parent=5 // pred_region
        // Predicated region
        $region17: #{tpu_custom_call.1} parent=15 // pred_check
          %p136 = pneg %p51
        $region18: #{tpu_custom_call.1} parent=15 // pred_check_branch
          %138 = sbr.rel (%p136) target = $region20
        $region19: #{tpu_custom_call.1} parent=15 // pred_region
          %s139 = smul.u32 %s18, 2
          %s140 = sadd.s32 %s139, %s19
          %p141 = scmp.lt.s32.totalorder %s140, 2
          %s142 = scalar_select %p141, %s140, 2
          %s143 = smul.u32 16, %s142
          %p144 = scmp.lt.s32.totalorder %s143, 47
          %s145 = scalar_select %p144, %s143, 47
          %s146 = smul.addr %s145, 4
          %s147 = scalar_lea.vmem %s0, %s146
          %s148 = smul.u32 %s18, 2
          %s149 = sadd.s32 %s148, %s19
          %p150 = scmp.lt.s32.totalorder %s149, 2
          %s151 = scalar_select %p150, %s149, 2
          %s152 = smul.u32 16, %s151
        $region20: #{tpu_custom_call.1} parent=15 // pred_fallthru
          _
        // Predicated region
        $region21: #{tpu_custom_call.1} parent=15 // pred_check
          %p153 = pneg %p85
        $region22: #{tpu_custom_call.1} parent=15 // pred_check_branch
          %155 = sbr.rel (%p153) target = $region24
        $region23: #{tpu_custom_call.1} parent=15 // pred_region
          %s156 = smul.u32 %s18, 2
          %s157 = sadd.s32 %s156, %s19
          %p158 = scmp.lt.s32.totalorder %s157, 2
          %s159 = scalar_select %p158, %s157, 2
          %s160 = smul.u32 16, %s159
          %p161 = scmp.lt.s32.totalorder %s160, 47
          %s162 = scalar_select %p161, %s160, 47
          %s163 = smul.addr %s162, 8
          %s164 = scalar_lea.vmem %s1, %s163
          %s165 = smul.u32 %s18, 2
          %s166 = sadd.s32 %s165, %s19
          %p167 = scmp.lt.s32.totalorder %s166, 2
          %s168 = scalar_select %p167, %s166, 2
          %s169 = smul.u32 16, %s168
        $region24: #{tpu_custom_call.1} parent=15 // pred_fallthru
          _
      $region16: #{tpu_custom_call.1} parent=5 // pred_fallthru
        _
      %p170 = scmp.le.s32.totalorder 1, %s11
      %p171 = scmp.lt.s32.totalorder %s11, 5
      %p172 = pnand %p170, %p171
      %p173 = pneg %p172
      // Predicated region
      $region25: #{tpu_custom_call.1} parent=5 // pred_check
        _
      $region26: #{tpu_custom_call.1} parent=5 // pred_check_branch
        %175 = sbr.rel (%p172) target = $region28
      $region27: #{tpu_custom_call.1} parent=5 // pred_region
        %s176 = ssub.s32 %s11, 1
        %s177 = smul.u32 %s20, 2
        %s178 = sadd.s32 %s177, %s21
        %p179 = scmp.lt.s32.totalorder %s178, 2
        %s180 = scalar_select %p179, %s178, 2
        %s181 = smul.u32 16, %s180
        %p182 = scmp.lt.s32.totalorder %s181, 47
        %s183 = scalar_select %p182, %s181, 47
        %s184 = smul.addr %s183, 4
        %s185 = scalar_lea.vmem %s0, %s184
        %p186 = pneg %p57
        %p187 = pneg %p54
        %s188 = smul.u32 %s20, 2
        %s189 = sadd.s32 %s188, %s21
        %p190 = scmp.lt.s32.totalorder %s189, 2
        %s191 = scalar_select %p190, %s189, 2
        %s192 = smul.u32 16, %s191
        %p193 = scmp.lt.s32.totalorder %s192, 47
        %s194 = scalar_select %p193, %s192, 47
        %s195 = smul.addr %s194, 8
        %s196 = scalar_lea.vmem %s1, %s195
        %p197 = pneg %p91
        %p198 = pneg %p88
        %p199 = pneg %p117
        %p200 = pneg %p114
        %s201 = sand.u32 %s104, 1
        %s202 = scalar_lea.sflag [#allocation3], %s201
        %s203 = sand.u32 %s104, 1
        %s204 = smul.addr %s203, 640
        %s205 = scalar_lea.vmem [#allocation2], %s204
        %s206 = smul.u32 %s20, 2
        %s207 = sadd.s32 %s206, %s21
        %p208 = scmp.lt.s32.totalorder %s207, 2
        %s209 = scalar_select %p208, %s207, 2
        %s210 = smul.u32 16, %s209
        %p211 = scmp.lt.s32.totalorder %s210, 47
        %s212 = scalar_select %p211, %s210, 47
        %s213 = smul.addr %s212, 4
        %s214 = scalar_lea.vmem %s0, %s213
        %s215 = smul.u32 %s20, 2
        %s216 = sadd.s32 %s215, %s21
        %p217 = scmp.lt.s32.totalorder %s216, 2
        %s218 = scalar_select %p217, %s216, 2
        %s219 = smul.u32 16, %s218
        %s220 = smul.u32 %s20, 2
        %s221 = sadd.s32 %s220, %s21
        %p222 = scmp.lt.s32.totalorder %s221, 2
        %s223 = scalar_select %p222, %s221, 2
        %s224 = smul.u32 16, %s223
        %p225 = scmp.lt.s32.totalorder %s224, 47
        %s226 = scalar_select %p225, %s224, 47
        %s227 = smul.addr %s226, 8
        %s228 = scalar_lea.vmem %s1, %s227
        %s229 = smul.u32 %s20, 2
        %s230 = sadd.s32 %s229, %s21
        %p231 = scmp.lt.s32.totalorder %s230, 2
        %s232 = scalar_select %p231, %s230, 2
        %s233 = smul.u32 16, %s232
        %p235 = scmp.eq.s32.totalorder %s21, 0
        // Predicated region
        $region29: #{tpu_custom_call.1} parent=27 // pred_check
          %p236 = pneg %p235
        $region30: #{tpu_custom_call.1} parent=27 // pred_check_branch
          %238 = sbr.rel (%p236) target = $region32
        $region31: #{tpu_custom_call.1} parent=27 // pred_region
          %239 = vst [vmem:[%s205] sm:$0xff] 0.0
          %240 = vst [vmem:[%s205 + $0x8] sm:$0xff] 0.0
          %241 = vst [vmem:[%s205 + $0x10] sm:$0xff] 0.0
          %242 = vst [vmem:[%s205 + $0x18] sm:$0xff] 0.0
          %243 = vst [vmem:[%s205 + $0x20] sm:$0xff] 0.0
          %244 = vst [vmem:[%s205 + $0x28] sm:$0xff] 0.0
          %245 = vst [vmem:[%s205 + $0x30] sm:$0xff] 0.0
          %246 = vst [vmem:[%s205 + $0x38] sm:$0xff] 0.0
          %247 = vst [vmem:[%s205 + $0x40] sm:$0xff] 0.0
          %248 = vst [vmem:[%s205 + $0x48] sm:$0xff] 0.0
          %249 = vst [vmem:[%s205 + $0x50] sm:$0xff] 0.0
          %250 = vst [vmem:[%s205 + $0x58] sm:$0xff] 0.0
          %251 = vst [vmem:[%s205 + $0x60] sm:$0xff] 0.0
          %252 = vst [vmem:[%s205 + $0x68] sm:$0xff] 0.0
          %253 = vst [vmem:[%s205 + $0x70] sm:$0xff] 0.0
          %254 = vst [vmem:[%s205 + $0x78] sm:$0xff] 0.0
          %255 = vst [vmem:[%s205 + $0x80] sm:$0xff] 0.0
          %256 = vst [vmem:[%s205 + $0x88] sm:$0xff] 0.0
          %257 = vst [vmem:[%s205 + $0x90] sm:$0xff] 0.0
          %258 = vst [vmem:[%s205 + $0x98] sm:$0xff] 0.0
          %259 = vst [vmem:[%s205 + $0xa0] sm:$0xff] 0.0
          %260 = vst [vmem:[%s205 + $0xa8] sm:$0xff] 0.0
          %261 = vst [vmem:[%s205 + $0xb0] sm:$0xff] 0.0
          %262 = vst [vmem:[%s205 + $0xb8] sm:$0xff] 0.0
          %263 = vst [vmem:[%s205 + $0xc0] sm:$0xff] 0.0
          %264 = vst [vmem:[%s205 + $0xc8] sm:$0xff] 0.0
          %265 = vst [vmem:[%s205 + $0xd0] sm:$0xff] 0.0
          %266 = vst [vmem:[%s205 + $0xd8] sm:$0xff] 0.0
          %267 = vst [vmem:[%s205 + $0xe0] sm:$0xff] 0.0
          %268 = vst [vmem:[%s205 + $0xe8] sm:$0xff] 0.0
          %269 = vst [vmem:[%s205 + $0xf0] sm:$0xff] 0.0
          %270 = vst [vmem:[%s205 + $0xf8] sm:$0xff] 0.0
          %271 = vst [vmem:[%s205 + $0x100] sm:$0xff] 0.0
          %272 = vst [vmem:[%s205 + $0x108] sm:$0xff] 0.0
          %273 = vst [vmem:[%s205 + $0x110] sm:$0xff] 0.0
          %274 = vst [vmem:[%s205 + $0x118] sm:$0xff] 0.0
          %275 = vst [vmem:[%s205 + $0x120] sm:$0xff] 0.0
          %276 = vst [vmem:[%s205 + $0x128] sm:$0xff] 0.0
          %277 = vst [vmem:[%s205 + $0x130] sm:$0xff] 0.0
          %278 = vst [vmem:[%s205 + $0x138] sm:$0xff] 0.0
          %279 = vst [vmem:[%s205 + $0x140] sm:$0xff] 0.0
          %280 = vst [vmem:[%s205 + $0x148] sm:$0xff] 0.0
          %281 = vst [vmem:[%s205 + $0x150] sm:$0xff] 0.0
          %282 = vst [vmem:[%s205 + $0x158] sm:$0xff] 0.0
          %283 = vst [vmem:[%s205 + $0x160] sm:$0xff] 0.0
          %284 = vst [vmem:[%s205 + $0x168] sm:$0xff] 0.0
          %285 = vst [vmem:[%s205 + $0x170] sm:$0xff] 0.0
          %286 = vst [vmem:[%s205 + $0x178] sm:$0xff] 0.0
          %287 = vst [vmem:[%s205 + $0x180] sm:$0xff] 0.0
          %288 = vst [vmem:[%s205 + $0x188] sm:$0xff] 0.0
          %289 = vst [vmem:[%s205 + $0x190] sm:$0xff] 0.0
          %290 = vst [vmem:[%s205 + $0x198] sm:$0xff] 0.0
          %291 = vst [vmem:[%s205 + $0x1a0] sm:$0xff] 0.0
          %292 = vst [vmem:[%s205 + $0x1a8] sm:$0xff] 0.0
          %293 = vst [vmem:[%s205 + $0x1b0] sm:$0xff] 0.0
          %294 = vst [vmem:[%s205 + $0x1b8] sm:$0xff] 0.0
          %295 = vst [vmem:[%s205 + $0x1c0] sm:$0xff] 0.0
          %296 = vst [vmem:[%s205 + $0x1c8] sm:$0xff] 0.0
          %297 = vst [vmem:[%s205 + $0x1d0] sm:$0xff] 0.0
          %298 = vst [vmem:[%s205 + $0x1d8] sm:$0xff] 0.0
          %299 = vst [vmem:[%s205 + $0x1e0] sm:$0xff] 0.0
          %300 = vst [vmem:[%s205 + $0x1e8] sm:$0xff] 0.0
          %301 = vst [vmem:[%s205 + $0x1f0] sm:$0xff] 0.0
          %302 = vst [vmem:[%s205 + $0x1f8] sm:$0xff] 0.0
          %303 = vst [vmem:[%s205 + $0x200] sm:$0xff] 0.0
          %304 = vst [vmem:[%s205 + $0x208] sm:$0xff] 0.0
          %305 = vst [vmem:[%s205 + $0x210] sm:$0xff] 0.0
          %306 = vst [vmem:[%s205 + $0x218] sm:$0xff] 0.0
          %307 = vst [vmem:[%s205 + $0x220] sm:$0xff] 0.0
          %308 = vst [vmem:[%s205 + $0x228] sm:$0xff] 0.0
          %309 = vst [vmem:[%s205 + $0x230] sm:$0xff] 0.0
          %310 = vst [vmem:[%s205 + $0x238] sm:$0xff] 0.0
          %311 = vst [vmem:[%s205 + $0x240] sm:$0xff] 0.0
          %312 = vst [vmem:[%s205 + $0x248] sm:$0xff] 0.0
          %313 = vst [vmem:[%s205 + $0x250] sm:$0xff] 0.0
          %314 = vst [vmem:[%s205 + $0x258] sm:$0xff] 0.0
          %315 = vst [vmem:[%s205 + $0x260] sm:$0xff] 0.0
          %316 = vst [vmem:[%s205 + $0x268] sm:$0xff] 0.0
          %317 = vst [vmem:[%s205 + $0x270] sm:$0xff] 0.0
          %318 = vst [vmem:[%s205 + $0x278] sm:$0xff] 0.0
        $region32: #{tpu_custom_call.1} parent=27 // pred_fallthru
          _
        %v319 = vld [vmem:[%s214] sm:$0xf]
        %v320 = vld [vmem:[%s214 + $0x4] sm:$0xf]
        %v321 = vld [vmem:[%s214 + $0x8] sm:$0xf]
        %v322 = vld [vmem:[%s214 + $0xc] sm:$0xf]
        %v323 = vld [vmem:[%s214 + $0x10] sm:$0xf]
        %v324 = vld [vmem:[%s214 + $0x14] sm:$0xf]
        %v325 = vld [vmem:[%s214 + $0x18] sm:$0xf]
        %v326 = vld [vmem:[%s214 + $0x1c] sm:$0xf]
        %v327 = vld [vmem:[%s214 + $0x20] sm:$0xf]
        %v328 = vld [vmem:[%s214 + $0x24] sm:$0xf]
        %v329 = vld [vmem:[%s214 + $0x28] sm:$0xf]
        %v330 = vld [vmem:[%s214 + $0x2c] sm:$0xf]
        %v331 = vld [vmem:[%s214 + $0x30] sm:$0xf]
        %v332 = vld [vmem:[%s214 + $0x34] sm:$0xf]
        %v333 = vld [vmem:[%s214 + $0x38] sm:$0xf]
        %v334 = vld [vmem:[%s214 + $0x3c] sm:$0xf]
        %v335 = vld [vmem:[%s228] sm:$0xff]
        %v336 = vld [vmem:[%s228 + $0x8] sm:$0xff]
        %v337 = vld [vmem:[%s228 + $0x10] sm:$0xff]
        %v338 = vld [vmem:[%s228 + $0x18] sm:$0xff]
        %v339 = vld [vmem:[%s228 + $0x20] sm:$0xff]
        %v340 = vld [vmem:[%s228 + $0x28] sm:$0xff]
        %v341 = vld [vmem:[%s228 + $0x30] sm:$0xff]
        %v342 = vld [vmem:[%s228 + $0x38] sm:$0xff]
        %v343 = vld [vmem:[%s228 + $0x40] sm:$0xff]
        %v344 = vld [vmem:[%s228 + $0x48] sm:$0xff]
        %v345 = vld [vmem:[%s228 + $0x50] sm:$0xff]
        %v346 = vld [vmem:[%s228 + $0x58] sm:$0xff]
        %v347 = vld [vmem:[%s228 + $0x60] sm:$0xff]
        %v348 = vld [vmem:[%s228 + $0x68] sm:$0xff]
        %v349 = vld [vmem:[%s228 + $0x70] sm:$0xff]
        %v350 = vld [vmem:[%s228 + $0x78] sm:$0xff]
        %s351 = smul.u32 %s20, 2
        %s352 = sadd.s32 %s351, %s21
        %s353 = smul.u32 %s352, 128
        %s354 = ssub.s32 384, %s353
        %v355 = vlaneseq
        %v356 = vshrl.u32 %v355, 7
        %v357 = vadd.s32 %v356, 8
        %v358 = vadd.s32 %v356, 16
        %v359 = vadd.s32 %v356, 24
        %v360 = vadd.s32 %v356, 32
        %v361 = vadd.s32 %v356, 40
        %v362 = vadd.s32 %v356, 48
        %v363 = vadd.s32 %v356, 56
        %v364 = vadd.s32 %v356, 64
        %v365 = vadd.s32 %v356, 72
        %v366 = vadd.s32 %v356, 80
        %v367 = vadd.s32 %v356, 88
        %v368 = vadd.s32 %v356, 96
        %v369 = vadd.s32 %v356, 104
        %v370 = vadd.s32 %v356, 112
        %v371 = vadd.s32 %v356, 120
        %v372 = vstv %s354
        %vm373 = vcmp.lt.s32.totalorder %v356, %v372
        %vm374 = vcmp.lt.s32.totalorder %v357, %v372
        %vm375 = vcmp.lt.s32.totalorder %v358, %v372
        %vm376 = vcmp.lt.s32.totalorder %v359, %v372
        %vm377 = vcmp.lt.s32.totalorder %v360, %v372
        %vm378 = vcmp.lt.s32.totalorder %v361, %v372
        %vm379 = vcmp.lt.s32.totalorder %v362, %v372
        %vm380 = vcmp.lt.s32.totalorder %v363, %v372
        %vm381 = vcmp.lt.s32.totalorder %v364, %v372
        %vm382 = vcmp.lt.s32.totalorder %v365, %v372
        %vm383 = vcmp.lt.s32.totalorder %v366, %v372
        %vm384 = vcmp.lt.s32.totalorder %v367, %v372
        %vm385 = vcmp.lt.s32.totalorder %v368, %v372
        %vm386 = vcmp.lt.s32.totalorder %v369, %v372
        %vm387 = vcmp.lt.s32.totalorder %v370, %v372
        %vm388 = vcmp.lt.s32.totalorder %v371, %v372
        %v389 = vsel %vm373, 1, 0
        %v390 = vsel %vm374, 1, 0
        %v391 = vsel %vm375, 1, 0
        %v392 = vsel %vm376, 1, 0
        %v393 = vsel %vm377, 1, 0
        %v394 = vsel %vm378, 1, 0
        %v395 = vsel %vm379, 1, 0
        %v396 = vsel %vm380, 1, 0
        %v397 = vsel %vm381, 1, 0
        %v398 = vsel %vm382, 1, 0
        %v399 = vsel %vm383, 1, 0
        %v400 = vsel %vm384, 1, 0
        %v401 = vsel %vm385, 1, 0
        %v402 = vsel %vm386, 1, 0
        %v403 = vsel %vm387, 1, 0
        %v404 = vsel %vm388, 1, 0
        %vm405 = vcmp.eq.s32.totalorder %v389, 1
        %vm406 = vcmp.eq.s32.totalorder %v390, 1
        %vm407 = vcmp.eq.s32.totalorder %v391, 1
        %vm408 = vcmp.eq.s32.totalorder %v392, 1
        %vm409 = vcmp.eq.s32.totalorder %v393, 1
        %vm410 = vcmp.eq.s32.totalorder %v394, 1
        %vm411 = vcmp.eq.s32.totalorder %v395, 1
        %vm412 = vcmp.eq.s32.totalorder %v396, 1
        %vm413 = vcmp.eq.s32.totalorder %v397, 1
        %vm414 = vcmp.eq.s32.totalorder %v398, 1
        %vm415 = vcmp.eq.s32.totalorder %v399, 1
        %vm416 = vcmp.eq.s32.totalorder %v400, 1
        %vm417 = vcmp.eq.s32.totalorder %v401, 1
        %vm418 = vcmp.eq.s32.totalorder %v402, 1
        %vm419 = vcmp.eq.s32.totalorder %v403, 1
        %vm420 = vcmp.eq.s32.totalorder %v404, 1
        %vm421 = vmpackc.low %vm405, %vm405
        %vm422 = vmpackc.low %vm406, %vm406
        %vm423 = vmpackc.low %vm407, %vm407
        %vm424 = vmpackc.low %vm408, %vm408
        %vm425 = vmpackc.low %vm409, %vm409
        %vm426 = vmpackc.low %vm410, %vm410
        %vm427 = vmpackc.low %vm411, %vm411
        %vm428 = vmpackc.low %vm412, %vm412
        %vm429 = vmpackc.low %vm413, %vm413
        %vm430 = vmpackc.low %vm414, %vm414
        %vm431 = vmpackc.low %vm415, %vm415
        %vm432 = vmpackc.low %vm416, %vm416
        %vm433 = vmpackc.low %vm417, %vm417
        %vm434 = vmpackc.low %vm418, %vm418
        %vm435 = vmpackc.low %vm419, %vm419
        %vm436 = vmpackc.low %vm420, %vm420
        %v437 = vsel %vm421, %v319, 0
        %v438 = vsel %vm422, %v320, 0
        %v439 = vsel %vm423, %v321, 0
        %v440 = vsel %vm424, %v322, 0
        %v441 = vsel %vm425, %v323, 0
        %v442 = vsel %vm426, %v324, 0
        %v443 = vsel %vm427, %v325, 0
        %v444 = vsel %vm428, %v326, 0
        %v445 = vsel %vm429, %v327, 0
        %v446 = vsel %vm430, %v328, 0
        %v447 = vsel %vm431, %v329, 0
        %v448 = vsel %vm432, %v330, 0
        %v449 = vsel %vm433, %v331, 0
        %v450 = vsel %vm434, %v332, 0
        %v451 = vsel %vm435, %v333, 0
        %v452 = vsel %vm436, %v334, 0
        %v453 = vsel %vm405, %v335, 0.0
        %v454 = vsel %vm406, %v336, 0.0
        %v455 = vsel %vm407, %v337, 0.0
        %v456 = vsel %vm408, %v338, 0.0
        %v457 = vsel %vm409, %v339, 0.0
        %v458 = vsel %vm410, %v340, 0.0
        %v459 = vsel %vm411, %v341, 0.0
        %v460 = vsel %vm412, %v342, 0.0
        %v461 = vsel %vm413, %v343, 0.0
        %v462 = vsel %vm414, %v344, 0.0
        %v463 = vsel %vm415, %v345, 0.0
        %v464 = vsel %vm416, %v346, 0.0
        %v465 = vsel %vm417, %v347, 0.0
        %v466 = vsel %vm418, %v348, 0.0
        %v467 = vsel %vm419, %v349, 0.0
        %v468 = vsel %vm420, %v350, 0.0
        %v469 = vunpack.c.l.bf16 %v437
        %v470 = vunpack.c.l.bf16 %v438
        %v471 = vunpack.c.l.bf16 %v439
        %v472 = vunpack.c.l.bf16 %v440
        %v473 = vunpack.c.l.bf16 %v441
        %v474 = vunpack.c.l.bf16 %v442
        %v475 = vunpack.c.l.bf16 %v443
        %v476 = vunpack.c.l.bf16 %v444
        %v477 = vunpack.c.l.bf16 %v445
        %v478 = vunpack.c.l.bf16 %v446
        %v479 = vunpack.c.l.bf16 %v447
        %v480 = vunpack.c.l.bf16 %v448
        %v481 = vunpack.c.l.bf16 %v449
        %v482 = vunpack.c.l.bf16 %v450
        %v483 = vunpack.c.l.bf16 %v451
        %v484 = vunpack.c.l.bf16 %v452
        %486 = vset.pattern.permute.xlu0 0
        %487 = vperm.xlu0 %486, %v453
        %v488 = vpop.permute.xlu0 %487
        %491 = vset.pattern.permute.xlu0 0
        %492 = vperm.xlu0 %491, %v454
        %v493 = vpop.permute.xlu0 %492
        %496 = vset.pattern.permute.xlu0 0
        %497 = vperm.xlu0 %496, %v455
        %v498 = vpop.permute.xlu0 %497
        %501 = vset.pattern.permute.xlu0 0
        %502 = vperm.xlu0 %501, %v456
        %v503 = vpop.permute.xlu0 %502
        %506 = vset.pattern.permute.xlu0 0
        %507 = vperm.xlu0 %506, %v457
        %v508 = vpop.permute.xlu0 %507
        %511 = vset.pattern.permute.xlu0 0
        %512 = vperm.xlu0 %511, %v458
        %v513 = vpop.permute.xlu0 %512
        %516 = vset.pattern.permute.xlu0 0
        %517 = vperm.xlu0 %516, %v459
        %v518 = vpop.permute.xlu0 %517
        %521 = vset.pattern.permute.xlu0 0
        %522 = vperm.xlu0 %521, %v460
        %v523 = vpop.permute.xlu0 %522
        %526 = vset.pattern.permute.xlu0 0
        %527 = vperm.xlu0 %526, %v461
        %v528 = vpop.permute.xlu0 %527
        %531 = vset.pattern.permute.xlu0 0
        %532 = vperm.xlu0 %531, %v462
        %v533 = vpop.permute.xlu0 %532
        %536 = vset.pattern.permute.xlu0 0
        %537 = vperm.xlu0 %536, %v463
        %v538 = vpop.permute.xlu0 %537
        %541 = vset.pattern.permute.xlu0 0
        %542 = vperm.xlu0 %541, %v464
        %v543 = vpop.permute.xlu0 %542
        %546 = vset.pattern.permute.xlu0 0
        %547 = vperm.xlu0 %546, %v465
        %v548 = vpop.permute.xlu0 %547
        %551 = vset.pattern.permute.xlu0 0
        %552 = vperm.xlu0 %551, %v466
        %v553 = vpop.permute.xlu0 %552
        %556 = vset.pattern.permute.xlu0 0
        %557 = vperm.xlu0 %556, %v467
        %v558 = vpop.permute.xlu0 %557
        %561 = vset.pattern.permute.xlu0 0
        %562 = vperm.xlu0 %561, %v468
        %v563 = vpop.permute.xlu0 %562
        %v565 = vmul.f32 %v469, %v488
        %v566 = vmul.f32 %v470, %v493
        %v567 = vmul.f32 %v471, %v498
        %v568 = vmul.f32 %v472, %v503
        %v569 = vmul.f32 %v473, %v508
        %v570 = vmul.f32 %v474, %v513
        %v571 = vmul.f32 %v475, %v518
        %v572 = vmul.f32 %v476, %v523
        %v573 = vmul.f32 %v477, %v528
        %v574 = vmul.f32 %v478, %v533
        %v575 = vmul.f32 %v479, %v538
        %v576 = vmul.f32 %v480, %v543
        %v577 = vmul.f32 %v481, %v548
        %v578 = vmul.f32 %v482, %v553
        %v579 = vmul.f32 %v483, %v558
        %v580 = vmul.f32 %v484, %v563
        %v581 = vpack.c.bf16 %v566, %v565
        %v582 = vpack.c.bf16 %v568, %v567
        %v583 = vpack.c.bf16 %v570, %v569
        %v584 = vpack.c.bf16 %v572, %v571
        %v585 = vpack.c.bf16 %v574, %v573
        %v586 = vpack.c.bf16 %v576, %v575
        %v587 = vpack.c.bf16 %v578, %v577
        %v588 = vpack.c.bf16 %v580, %v579
        %589 = vset.pattern.permute.xlu0 1
        %590 = vperm.xlu0 %589, %v453
        %v591 = vpop.permute.xlu0 %590
        %593 = vset.pattern.permute.xlu0 1
        %594 = vperm.xlu0 %593, %v454
        %v595 = vpop.permute.xlu0 %594
        %597 = vset.pattern.permute.xlu0 1
        %598 = vperm.xlu0 %597, %v455
        %v599 = vpop.permute.xlu0 %598
        %601 = vset.pattern.permute.xlu0 1
        %602 = vperm.xlu0 %601, %v456
        %v603 = vpop.permute.xlu0 %602
        %605 = vset.pattern.permute.xlu0 1
        %606 = vperm.xlu0 %605, %v457
        %v607 = vpop.permute.xlu0 %606
        %609 = vset.pattern.permute.xlu0 1
        %610 = vperm.xlu0 %609, %v458
        %v611 = vpop.permute.xlu0 %610
        %613 = vset.pattern.permute.xlu0 1
        %614 = vperm.xlu0 %613, %v459
        %v615 = vpop.permute.xlu0 %614
        %617 = vset.pattern.permute.xlu0 1
        %618 = vperm.xlu0 %617, %v460
        %v619 = vpop.permute.xlu0 %618
        %621 = vset.pattern.permute.xlu0 1
        %622 = vperm.xlu0 %621, %v461
        %v623 = vpop.permute.xlu0 %622
        %625 = vset.pattern.permute.xlu0 1
        %626 = vperm.xlu0 %625, %v462
        %v627 = vpop.permute.xlu0 %626
        %629 = vset.pattern.permute.xlu0 1
        %630 = vperm.xlu0 %629, %v463
        %v631 = vpop.permute.xlu0 %630
        %633 = vset.pattern.permute.xlu0 1
        %634 = vperm.xlu0 %633, %v464
        %v635 = vpop.permute.xlu0 %634
        %637 = vset.pattern.permute.xlu0 1
        %638 = vperm.xlu0 %637, %v465
        %v639 = vpop.permute.xlu0 %638
        %641 = vset.pattern.permute.xlu0 1
        %642 = vperm.xlu0 %641, %v466
        %v643 = vpop.permute.xlu0 %642
        %645 = vset.pattern.permute.xlu0 1
        %646 = vperm.xlu0 %645, %v467
        %v647 = vpop.permute.xlu0 %646
        %649 = vset.pattern.permute.xlu0 1
        %650 = vperm.xlu0 %649, %v468
        %v651 = vpop.permute.xlu0 %650
        %v653 = vmul.f32 %v469, %v591
        %v654 = vmul.f32 %v470, %v595
        %v655 = vmul.f32 %v471, %v599
        %v656 = vmul.f32 %v472, %v603
        %v657 = vmul.f32 %v473, %v607
        %v658 = vmul.f32 %v474, %v611
        %v659 = vmul.f32 %v475, %v615
        %v660 = vmul.f32 %v476, %v619
        %v661 = vmul.f32 %v477, %v623
        %v662 = vmul.f32 %v478, %v627
        %v663 = vmul.f32 %v479, %v631
        %v664 = vmul.f32 %v480, %v635
        %v665 = vmul.f32 %v481, %v639
        %v666 = vmul.f32 %v482, %v643
        %v667 = vmul.f32 %v483, %v647
        %v668 = vmul.f32 %v484, %v651
        %v669 = vpack.c.bf16 %v654, %v653
        %v670 = vpack.c.bf16 %v656, %v655
        %v671 = vpack.c.bf16 %v658, %v657
        %v672 = vpack.c.bf16 %v660, %v659
        %v673 = vpack.c.bf16 %v662, %v661
        %v674 = vpack.c.bf16 %v664, %v663
        %v675 = vpack.c.bf16 %v666, %v665
        %v676 = vpack.c.bf16 %v668, %v667
        %677 = vset.pattern.permute.xlu0 2
        %678 = vperm.xlu0 %677, %v453
        %v679 = vpop.permute.xlu0 %678
        %681 = vset.pattern.permute.xlu0 2
        %682 = vperm.xlu0 %681, %v454
        %v683 = vpop.permute.xlu0 %682
        %685 = vset.pattern.permute.xlu0 2
        %686 = vperm.xlu0 %685, %v455
        %v687 = vpop.permute.xlu0 %686
        %689 = vset.pattern.permute.xlu0 2
        %690 = vperm.xlu0 %689, %v456
        %v691 = vpop.permute.xlu0 %690
        %693 = vset.pattern.permute.xlu0 2
        %694 = vperm.xlu0 %693, %v457
        %v695 = vpop.permute.xlu0 %694
        %697 = vset.pattern.permute.xlu0 2
        %698 = vperm.xlu0 %697, %v458
        %v699 = vpop.permute.xlu0 %698
        %701 = vset.pattern.permute.xlu0 2
        %702 = vperm.xlu0 %701, %v459
        %v703 = vpop.permute.xlu0 %702
        %705 = vset.pattern.permute.xlu0 2
        %706 = vperm.xlu0 %705, %v460
        %v707 = vpop.permute.xlu0 %706
        %709 = vset.pattern.permute.xlu0 2
        %710 = vperm.xlu0 %709, %v461
        %v711 = vpop.permute.xlu0 %710
        %713 = vset.pattern.permute.xlu0 2
        %714 = vperm.xlu0 %713, %v462
        %v715 = vpop.permute.xlu0 %714
        %717 = vset.pattern.permute.xlu0 2
        %718 = vperm.xlu0 %717, %v463
        %v719 = vpop.permute.xlu0 %718
        %721 = vset.pattern.permute.xlu0 2
        %722 = vperm.xlu0 %721, %v464
        %v723 = vpop.permute.xlu0 %722
        %725 = vset.pattern.permute.xlu0 2
        %726 = vperm.xlu0 %725, %v465
        %v727 = vpop.permute.xlu0 %726
        %729 = vset.pattern.permute.xlu0 2
        %730 = vperm.xlu0 %729, %v466
        %v731 = vpop.permute.xlu0 %730
        %733 = vset.pattern.permute.xlu0 2
        %734 = vperm.xlu0 %733, %v467
        %v735 = vpop.permute.xlu0 %734
        %737 = vset.pattern.permute.xlu0 2
        %738 = vperm.xlu0 %737, %v468
        %v739 = vpop.permute.xlu0 %738
        %v741 = vmul.f32 %v469, %v679
        %v742 = vmul.f32 %v470, %v683
        %v743 = vmul.f32 %v471, %v687
        %v744 = vmul.f32 %v472, %v691
        %v745 = vmul.f32 %v473, %v695
        %v746 = vmul.f32 %v474, %v699
        %v747 = vmul.f32 %v475, %v703
        %v748 = vmul.f32 %v476, %v707
        %v749 = vmul.f32 %v477, %v711
        %v750 = vmul.f32 %v478, %v715
        %v751 = vmul.f32 %v479, %v719
        %v752 = vmul.f32 %v480, %v723
        %v753 = vmul.f32 %v481, %v727
        %v754 = vmul.f32 %v482, %v731
        %v755 = vmul.f32 %v483, %v735
        %v756 = vmul.f32 %v484, %v739
        %v757 = vpack.c.bf16 %v742, %v741
        %v758 = vpack.c.bf16 %v744, %v743
        %v759 = vpack.c.bf16 %v746, %v745
        %v760 = vpack.c.bf16 %v748, %v747
        %v761 = vpack.c.bf16 %v750, %v749
        %v762 = vpack.c.bf16 %v752, %v751
        %v763 = vpack.c.bf16 %v754, %v753
        %v764 = vpack.c.bf16 %v756, %v755
        %765 = vset.pattern.permute.xlu0 3
        %766 = vperm.xlu0 %765, %v453
        %v767 = vpop.permute.xlu0 %766
        %769 = vset.pattern.permute.xlu0 3
        %770 = vperm.xlu0 %769, %v454
        %v771 = vpop.permute.xlu0 %770
        %773 = vset.pattern.permute.xlu0 3
        %774 = vperm.xlu0 %773, %v455
        %v775 = vpop.permute.xlu0 %774
        %777 = vset.pattern.permute.xlu0 3
        %778 = vperm.xlu0 %777, %v456
        %v779 = vpop.permute.xlu0 %778
        %781 = vset.pattern.permute.xlu0 3
        %782 = vperm.xlu0 %781, %v457
        %v783 = vpop.permute.xlu0 %782
        %785 = vset.pattern.permute.xlu0 3
        %786 = vperm.xlu0 %785, %v458
        %v787 = vpop.permute.xlu0 %786
        %789 = vset.pattern.permute.xlu0 3
        %790 = vperm.xlu0 %789, %v459
        %v791 = vpop.permute.xlu0 %790
        %793 = vset.pattern.permute.xlu0 3
        %794 = vperm.xlu0 %793, %v460
        %v795 = vpop.permute.xlu0 %794
        %797 = vset.pattern.permute.xlu0 3
        %798 = vperm.xlu0 %797, %v461
        %v799 = vpop.permute.xlu0 %798
        %801 = vset.pattern.permute.xlu0 3
        %802 = vperm.xlu0 %801, %v462
        %v803 = vpop.permute.xlu0 %802
        %805 = vset.pattern.permute.xlu0 3
        %806 = vperm.xlu0 %805, %v463
        %v807 = vpop.permute.xlu0 %806
        %809 = vset.pattern.permute.xlu0 3
        %810 = vperm.xlu0 %809, %v464
        %v811 = vpop.permute.xlu0 %810
        %813 = vset.pattern.permute.xlu0 3
        %814 = vperm.xlu0 %813, %v465
        %v815 = vpop.permute.xlu0 %814
        %817 = vset.pattern.permute.xlu0 3
        %818 = vperm.xlu0 %817, %v466
        %v819 = vpop.permute.xlu0 %818
        %821 = vset.pattern.permute.xlu0 3
        %822 = vperm.xlu0 %821, %v467
        %v823 = vpop.permute.xlu0 %822
        %825 = vset.pattern.permute.xlu0 3
        %826 = vperm.xlu0 %825, %v468
        %v827 = vpop.permute.xlu0 %826
        %v829 = vmul.f32 %v469, %v767
        %v830 = vmul.f32 %v470, %v771
        %v831 = vmul.f32 %v471, %v775
        %v832 = vmul.f32 %v472, %v779
        %v833 = vmul.f32 %v473, %v783
        %v834 = vmul.f32 %v474, %v787
        %v835 = vmul.f32 %v475, %v791
        %v836 = vmul.f32 %v476, %v795
        %v837 = vmul.f32 %v477, %v799
        %v838 = vmul.f32 %v478, %v803
        %v839 = vmul.f32 %v479, %v807
        %v840 = vmul.f32 %v480, %v811
        %v841 = vmul.f32 %v481, %v815
        %v842 = vmul.f32 %v482, %v819
        %v843 = vmul.f32 %v483, %v823
        %v844 = vmul.f32 %v484, %v827
        %v845 = vpack.c.bf16 %v830, %v829
        %v846 = vpack.c.bf16 %v832, %v831
        %v847 = vpack.c.bf16 %v834, %v833
        %v848 = vpack.c.bf16 %v836, %v835
        %v849 = vpack.c.bf16 %v838, %v837
        %v850 = vpack.c.bf16 %v840, %v839
        %v851 = vpack.c.bf16 %v842, %v841
        %v852 = vpack.c.bf16 %v844, %v843
        %853 = vset.pattern.permute.xlu0 4
        %854 = vperm.xlu0 %853, %v453
        %v855 = vpop.permute.xlu0 %854
        %857 = vset.pattern.permute.xlu0 4
        %858 = vperm.xlu0 %857, %v454
        %v859 = vpop.permute.xlu0 %858
        %861 = vset.pattern.permute.xlu0 4
        %862 = vperm.xlu0 %861, %v455
        %v863 = vpop.permute.xlu0 %862
        %865 = vset.pattern.permute.xlu0 4
        %866 = vperm.xlu0 %865, %v456
        %v867 = vpop.permute.xlu0 %866
        %869 = vset.pattern.permute.xlu0 4
        %870 = vperm.xlu0 %869, %v457
        %v871 = vpop.permute.xlu0 %870
        %873 = vset.pattern.permute.xlu0 4
        %874 = vperm.xlu0 %873, %v458
        %v875 = vpop.permute.xlu0 %874
        %877 = vset.pattern.permute.xlu0 4
        %878 = vperm.xlu0 %877, %v459
        %v879 = vpop.permute.xlu0 %878
        %881 = vset.pattern.permute.xlu0 4
        %882 = vperm.xlu0 %881, %v460
        %v883 = vpop.permute.xlu0 %882
        %885 = vset.pattern.permute.xlu0 4
        %886 = vperm.xlu0 %885, %v461
        %v887 = vpop.permute.xlu0 %886
        %889 = vset.pattern.permute.xlu0 4
        %890 = vperm.xlu0 %889, %v462
        %v891 = vpop.permute.xlu0 %890
        %893 = vset.pattern.permute.xlu0 4
        %894 = vperm.xlu0 %893, %v463
        %v895 = vpop.permute.xlu0 %894
        %897 = vset.pattern.permute.xlu0 4
        %898 = vperm.xlu0 %897, %v464
        %v899 = vpop.permute.xlu0 %898
        %901 = vset.pattern.permute.xlu0 4
        %902 = vperm.xlu0 %901, %v465
        %v903 = vpop.permute.xlu0 %902
        %905 = vset.pattern.permute.xlu0 4
        %906 = vperm.xlu0 %905, %v466
        %v907 = vpop.permute.xlu0 %906
        %909 = vset.pattern.permute.xlu0 4
        %910 = vperm.xlu0 %909, %v467
        %v911 = vpop.permute.xlu0 %910
        %913 = vset.pattern.permute.xlu0 4
        %914 = vperm.xlu0 %913, %v468
        %v915 = vpop.permute.xlu0 %914
        %v917 = vmul.f32 %v469, %v855
        %v918 = vmul.f32 %v470, %v859
        %v919 = vmul.f32 %v471, %v863
        %v920 = vmul.f32 %v472, %v867
        %v921 = vmul.f32 %v473, %v871
        %v922 = vmul.f32 %v474, %v875
        %v923 = vmul.f32 %v475, %v879
        %v924 = vmul.f32 %v476, %v883
        %v925 = vmul.f32 %v477, %v887
        %v926 = vmul.f32 %v478, %v891
        %v927 = vmul.f32 %v479, %v895
        %v928 = vmul.f32 %v480, %v899
        %v929 = vmul.f32 %v481, %v903
        %v930 = vmul.f32 %v482, %v907
        %v931 = vmul.f32 %v483, %v911
        %v932 = vmul.f32 %v484, %v915
        %v933 = vpack.c.bf16 %v918, %v917
        %v934 = vpack.c.bf16 %v920, %v919
        %v935 = vpack.c.bf16 %v922, %v921
        %v936 = vpack.c.bf16 %v924, %v923
        %v937 = vpack.c.bf16 %v926, %v925
        %v938 = vpack.c.bf16 %v928, %v927
        %v939 = vpack.c.bf16 %v930, %v929
        %v940 = vpack.c.bf16 %v932, %v931
        %v941 = vld [vmem:[%s205] sm:$0xff]
        %v942 = vld [vmem:[%s205 + $0x8] sm:$0xff]
        %v943 = vld [vmem:[%s205 + $0x10] sm:$0xff]
        %v944 = vld [vmem:[%s205 + $0x18] sm:$0xff]
        %v945 = vld [vmem:[%s205 + $0x20] sm:$0xff]
        %v946 = vld [vmem:[%s205 + $0x28] sm:$0xff]
        %v947 = vld [vmem:[%s205 + $0x30] sm:$0xff]
        %v948 = vld [vmem:[%s205 + $0x38] sm:$0xff]
        %v949 = vld [vmem:[%s205 + $0x40] sm:$0xff]
        %v950 = vld [vmem:[%s205 + $0x48] sm:$0xff]
        %v951 = vld [vmem:[%s205 + $0x50] sm:$0xff]
        %v952 = vld [vmem:[%s205 + $0x58] sm:$0xff]
        %v953 = vld [vmem:[%s205 + $0x60] sm:$0xff]
        %v954 = vld [vmem:[%s205 + $0x68] sm:$0xff]
        %v955 = vld [vmem:[%s205 + $0x70] sm:$0xff]
        %v956 = vld [vmem:[%s205 + $0x78] sm:$0xff]
        %v957 = vld [vmem:[%s205 + $0x80] sm:$0xff]
        %v958 = vld [vmem:[%s205 + $0x88] sm:$0xff]
        %v959 = vld [vmem:[%s205 + $0x90] sm:$0xff]
        %v960 = vld [vmem:[%s205 + $0x98] sm:$0xff]
        %v961 = vld [vmem:[%s205 + $0xa0] sm:$0xff]
        %v962 = vld [vmem:[%s205 + $0xa8] sm:$0xff]
        %v963 = vld [vmem:[%s205 + $0xb0] sm:$0xff]
        %v964 = vld [vmem:[%s205 + $0xb8] sm:$0xff]
        %v965 = vld [vmem:[%s205 + $0xc0] sm:$0xff]
        %v966 = vld [vmem:[%s205 + $0xc8] sm:$0xff]
        %v967 = vld [vmem:[%s205 + $0xd0] sm:$0xff]
        %v968 = vld [vmem:[%s205 + $0xd8] sm:$0xff]
        %v969 = vld [vmem:[%s205 + $0xe0] sm:$0xff]
        %v970 = vld [vmem:[%s205 + $0xe8] sm:$0xff]
        %v971 = vld [vmem:[%s205 + $0xf0] sm:$0xff]
        %v972 = vld [vmem:[%s205 + $0xf8] sm:$0xff]
        %v973 = vld [vmem:[%s205 + $0x100] sm:$0xff]
        %v974 = vld [vmem:[%s205 + $0x108] sm:$0xff]
        %v975 = vld [vmem:[%s205 + $0x110] sm:$0xff]
        %v976 = vld [vmem:[%s205 + $0x118] sm:$0xff]
        %v977 = vld [vmem:[%s205 + $0x120] sm:$0xff]
        %v978 = vld [vmem:[%s205 + $0x128] sm:$0xff]
        %v979 = vld [vmem:[%s205 + $0x130] sm:$0xff]
        %v980 = vld [vmem:[%s205 + $0x138] sm:$0xff]
        %v981 = vld [vmem:[%s205 + $0x140] sm:$0xff]
        %v982 = vld [vmem:[%s205 + $0x148] sm:$0xff]
        %v983 = vld [vmem:[%s205 + $0x150] sm:$0xff]
        %v984 = vld [vmem:[%s205 + $0x158] sm:$0xff]
        %v985 = vld [vmem:[%s205 + $0x160] sm:$0xff]
        %v986 = vld [vmem:[%s205 + $0x168] sm:$0xff]
        %v987 = vld [vmem:[%s205 + $0x170] sm:$0xff]
        %v988 = vld [vmem:[%s205 + $0x178] sm:$0xff]
        %v989 = vld [vmem:[%s205 + $0x180] sm:$0xff]
        %v990 = vld [vmem:[%s205 + $0x188] sm:$0xff]
        %v991 = vld [vmem:[%s205 + $0x190] sm:$0xff]
        %v992 = vld [vmem:[%s205 + $0x198] sm:$0xff]
        %v993 = vld [vmem:[%s205 + $0x1a0] sm:$0xff]
        %v994 = vld [vmem:[%s205 + $0x1a8] sm:$0xff]
        %v995 = vld [vmem:[%s205 + $0x1b0] sm:$0xff]
        %v996 = vld [vmem:[%s205 + $0x1b8] sm:$0xff]
        %v997 = vld [vmem:[%s205 + $0x1c0] sm:$0xff]
        %v998 = vld [vmem:[%s205 + $0x1c8] sm:$0xff]
        %v999 = vld [vmem:[%s205 + $0x1d0] sm:$0xff]
        %v1000 = vld [vmem:[%s205 + $0x1d8] sm:$0xff]
        %v1001 = vld [vmem:[%s205 + $0x1e0] sm:$0xff]
        %v1002 = vld [vmem:[%s205 + $0x1e8] sm:$0xff]
        %v1003 = vld [vmem:[%s205 + $0x1f0] sm:$0xff]
        %v1004 = vld [vmem:[%s205 + $0x1f8] sm:$0xff]
        %v1005 = vld [vmem:[%s205 + $0x200] sm:$0xff]
        %v1006 = vld [vmem:[%s205 + $0x208] sm:$0xff]
        %v1007 = vld [vmem:[%s205 + $0x210] sm:$0xff]
        %v1008 = vld [vmem:[%s205 + $0x218] sm:$0xff]
        %v1009 = vld [vmem:[%s205 + $0x220] sm:$0xff]
        %v1010 = vld [vmem:[%s205 + $0x228] sm:$0xff]
        %v1011 = vld [vmem:[%s205 + $0x230] sm:$0xff]
        %v1012 = vld [vmem:[%s205 + $0x238] sm:$0xff]
        %v1013 = vld [vmem:[%s205 + $0x240] sm:$0xff]
        %v1014 = vld [vmem:[%s205 + $0x248] sm:$0xff]
        %v1015 = vld [vmem:[%s205 + $0x250] sm:$0xff]
        %v1016 = vld [vmem:[%s205 + $0x258] sm:$0xff]
        %v1017 = vld [vmem:[%s205 + $0x260] sm:$0xff]
        %v1018 = vld [vmem:[%s205 + $0x268] sm:$0xff]
        %v1019 = vld [vmem:[%s205 + $0x270] sm:$0xff]
        %v1020 = vld [vmem:[%s205 + $0x278] sm:$0xff]
        %v1037 = vunpack.c.l.b16 %v437
        %v1038 = vunpack.c.l.b16 %v438
        %v1039 = vunpack.c.l.b16 %v439
        %v1040 = vunpack.c.l.b16 %v440
        %v1041 = vunpack.c.l.b16 %v441
        %v1042 = vunpack.c.l.b16 %v442
        %v1043 = vunpack.c.l.b16 %v443
        %v1044 = vunpack.c.l.b16 %v444
        %v1045 = vunpack.c.l.b16 %v445
        %v1046 = vunpack.c.l.b16 %v446
        %v1047 = vunpack.c.l.b16 %v447
        %v1048 = vunpack.c.l.b16 %v448
        %v1049 = vunpack.c.l.b16 %v449
        %v1050 = vunpack.c.l.b16 %v450
        %v1051 = vunpack.c.l.b16 %v451
        %v1052 = vunpack.c.l.b16 %v452
        %v1053 = vpack.c.b16 %v1038, %v1037
        %v1054 = vpack.c.b16 %v1040, %v1039
        %v1055 = vpack.c.b16 %v1042, %v1041
        %v1056 = vpack.c.b16 %v1044, %v1043
        %v1057 = vpack.c.b16 %v1046, %v1045
        %v1058 = vpack.c.b16 %v1048, %v1047
        %v1059 = vpack.c.b16 %v1050, %v1049
        %v1060 = vpack.c.b16 %v1052, %v1051
        %1069 = vxpose.xlu0.c.b16.start [1/8] %v1053, 128
        %1070 = vxpose.xlu0.c.b16.cont [2/8] %v1054, 128
        %1071 = vxpose.xlu0.c.b16.cont [3/8] %v1055, 128
        %1072 = vxpose.xlu0.c.b16.cont [4/8] %v1056, 128
        %1073 = vxpose.xlu0.c.b16.cont [5/8] %v1057, 128
        %1074 = vxpose.xlu0.c.b16.cont [6/8] %v1058, 128
        %1075 = vxpose.xlu0.c.b16.cont [7/8] %v1059, 128
        %1076 = vxpose.xlu0.c.b16.end [8/8] %v1060, 128
        %v1077 = vpop.trf.xlu0
        %v1078 = vpop.trf.xlu0
        %v1079 = vpop.trf.xlu0
        %v1080 = vpop.trf.xlu0
        %v1081 = vpop.trf.xlu0
        %v1082 = vpop.trf.xlu0
        %v1083 = vpop.trf.xlu0
        %v1084 = vpop.trf.xlu0
        %1085 = vmatprep.subr.bf16.mxu0 %v669
        %1086 = vmatpush1.bf16.msra.mxu0 %v581
        %1087 = vmatprep.subr.bf16.mxu0 %v670
        %1088 = vmatpush1.bf16.msra.mxu0 %v582
        %1089 = vmatprep.subr.bf16.mxu0 %v671
        %1090 = vmatpush1.bf16.msra.mxu0 %v583
        %1091 = vmatprep.subr.bf16.mxu0 %v672
        %1092 = vmatpush1.bf16.msra.mxu0 %v584
        %1093 = vmatprep.subr.bf16.mxu0 %v673
        %1094 = vmatpush1.bf16.msra.mxu0 %v585
        %1095 = vmatprep.subr.bf16.mxu0 %v674
        %1096 = vmatpush1.bf16.msra.mxu0 %v586
        %1097 = vmatprep.subr.bf16.mxu0 %v675
        %1098 = vmatpush1.bf16.msra.mxu0 %v587
        %1099 = vmatprep.subr.bf16.mxu0 %v676
        %1100 = vmatpush1.bf16.msra.mxu0 %v588
        %1101 = vmatprep.subr.bf16.mxu0 0
        %1102 = vmatpush1.bf16.msra.mxu0 0
        %1103 = vmatprep.subr.bf16.mxu0 0
        %1104 = vmatpush1.bf16.msra.mxu0 0
        %1105 = vmatprep.subr.bf16.mxu0 0
        %1106 = vmatpush1.bf16.msra.mxu0 0
        %1107 = vmatprep.subr.bf16.mxu0 0
        %1108 = vmatpush1.bf16.msra.mxu0 0
        %1109 = vmatprep.subr.bf16.mxu0 0
        %1110 = vmatpush1.bf16.msra.mxu0 0
        %1111 = vmatprep.subr.bf16.mxu0 0
        %1112 = vmatpush1.bf16.msra.mxu0 0
        %1113 = vmatprep.subr.bf16.mxu0 0
        %1114 = vmatpush1.bf16.msra.mxu0 0
        %1115 = vmatprep.subr.bf16.mxu0 0
        %1116 = vmatpush1.bf16.msra.mxu0 0
        %1117 = vmatprep.mubr.bf16.mxu0 0
        %1118 = vmatmul.mubr.bf16.gmra.mrb[0].mxu0 %v1077
        %v1119 = vpop.f32.mrb[0].mxu0
        %v1120 = vadd.f32 0.0, %v1119
        %v1121 = vpop.f32.mrb[0].mxu0
        %v1122 = vadd.f32 0.0, %v1121
        %v1123 = vpop.f32.mrb[0].mxu0
        %v1124 = vadd.f32 0.0, %v1123
        %v1125 = vpop.f32.mrb[0].mxu0
        %v1126 = vadd.f32 0.0, %v1125
        %1127 = vmatprep.mubr.bf16.mxu0 0
        %1128 = vmatmul.mubr.bf16.gmra.mrb[0].mxu0 %v1078
        %v1129 = vpop.f32.mrb[0].mxu0
        %v1130 = vadd.f32 0.0, %v1129
        %v1131 = vpop.f32.mrb[0].mxu0
        %v1132 = vadd.f32 0.0, %v1131
        %v1133 = vpop.f32.mrb[0].mxu0
        %v1134 = vadd.f32 0.0, %v1133
        %v1135 = vpop.f32.mrb[0].mxu0
        %v1136 = vadd.f32 0.0, %v1135
        %1137 = vmatprep.mubr.bf16.mxu0 0
        %1138 = vmatmul.mubr.bf16.gmra.mrb[0].mxu0 %v1079
        %v1139 = vpop.f32.mrb[0].mxu0
        %v1140 = vadd.f32 0.0, %v1139
        %v1141 = vpop.f32.mrb[0].mxu0
        %v1142 = vadd.f32 0.0, %v1141
        %v1143 = vpop.f32.mrb[0].mxu0
        %v1144 = vadd.f32 0.0, %v1143
        %v1145 = vpop.f32.mrb[0].mxu0
        %v1146 = vadd.f32 0.0, %v1145
        %1147 = vmatprep.mubr.bf16.mxu0 0
        %1148 = vmatmul.mubr.bf16.gmra.mrb[0].mxu0 %v1080
        %v1149 = vpop.f32.mrb[0].mxu0
        %v1150 = vadd.f32 0.0, %v1149
        %v1151 = vpop.f32.mrb[0].mxu0
        %v1152 = vadd.f32 0.0, %v1151
        %v1153 = vpop.f32.mrb[0].mxu0
        %v1154 = vadd.f32 0.0, %v1153
        %v1155 = vpop.f32.mrb[0].mxu0
        %v1156 = vadd.f32 0.0, %v1155
        %1157 = vmatprep.mubr.bf16.mxu0 0
        %1158 = vmatmul.mubr.bf16.gmra.mrb[0].mxu0 %v1081
        %v1159 = vpop.f32.mrb[0].mxu0
        %v1160 = vadd.f32 0.0, %v1159
        %v1161 = vpop.f32.mrb[0].mxu0
        %v1162 = vadd.f32 0.0, %v1161
        %v1163 = vpop.f32.mrb[0].mxu0
        %v1164 = vadd.f32 0.0, %v1163
        %v1165 = vpop.f32.mrb[0].mxu0
        %v1166 = vadd.f32 0.0, %v1165
        %1167 = vmatprep.mubr.bf16.mxu0 0
        %1168 = vmatmul.mubr.bf16.gmra.mrb[0].mxu0 %v1082
        %v1169 = vpop.f32.mrb[0].mxu0
        %v1170 = vadd.f32 0.0, %v1169
        %v1171 = vpop.f32.mrb[0].mxu0
        %v1172 = vadd.f32 0.0, %v1171
        %v1173 = vpop.f32.mrb[0].mxu0
        %v1174 = vadd.f32 0.0, %v1173
        %v1175 = vpop.f32.mrb[0].mxu0
        %v1176 = vadd.f32 0.0, %v1175
        %1177 = vmatprep.mubr.bf16.mxu0 0
        %1178 = vmatmul.mubr.bf16.gmra.mrb[0].mxu0 %v1083
        %v1179 = vpop.f32.mrb[0].mxu0
        %v1180 = vadd.f32 0.0, %v1179
        %v1181 = vpop.f32.mrb[0].mxu0
        %v1182 = vadd.f32 0.0, %v1181
        %v1183 = vpop.f32.mrb[0].mxu0
        %v1184 = vadd.f32 0.0, %v1183
        %v1185 = vpop.f32.mrb[0].mxu0
        %v1186 = vadd.f32 0.0, %v1185
        %1187 = vmatprep.mubr.bf16.mxu0 0
        %1188 = vmatmul.mubr.bf16.gmra.mrb[0].mxu0 %v1084
        %v1189 = vpop.f32.mrb[0].mxu0
        %v1190 = vadd.f32 0.0, %v1189
        %v1191 = vpop.f32.mrb[0].mxu0
        %v1192 = vadd.f32 0.0, %v1191
        %v1193 = vpop.f32.mrb[0].mxu0
        %v1194 = vadd.f32 0.0, %v1193
        %v1195 = vpop.f32.mrb[0].mxu0
        %v1196 = vadd.f32 0.0, %v1195
        %1197 = vdwg.mxu0
        %1198 = vmatprep.subr.bf16.mxu0 %v845
        %1199 = vmatpush1.bf16.msra.mxu0 %v757
        %1200 = vmatprep.subr.bf16.mxu0 %v846
        %1201 = vmatpush1.bf16.msra.mxu0 %v758
        %1202 = vmatprep.subr.bf16.mxu0 %v847
        %1203 = vmatpush1.bf16.msra.mxu0 %v759
        %1204 = vmatprep.subr.bf16.mxu0 %v848
        %1205 = vmatpush1.bf16.msra.mxu0 %v760
        %1206 = vmatprep.subr.bf16.mxu0 %v849
        %1207 = vmatpush1.bf16.msra.mxu0 %v761
        %1208 = vmatprep.subr.bf16.mxu0 %v850
        %1209 = vmatpush1.bf16.msra.mxu0 %v762
        %1210 = vmatprep.subr.bf16.mxu0 %v851
        %1211 = vmatpush1.bf16.msra.mxu0 %v763
        %1212 = vmatprep.subr.bf16.mxu0 %v852
        %1213 = vmatpush1.bf16.msra.mxu0 %v764
        %1214 = vmatprep.subr.bf16.mxu0 0
        %1215 = vmatpush1.bf16.msra.mxu0 0
        %1216 = vmatprep.subr.bf16.mxu0 0
        %1217 = vmatpush1.bf16.msra.mxu0 0
        %1218 = vmatprep.subr.bf16.mxu0 0
        %1219 = vmatpush1.bf16.msra.mxu0 0
        %1220 = vmatprep.subr.bf16.mxu0 0
        %1221 = vmatpush1.bf16.msra.mxu0 0
        %1222 = vmatprep.subr.bf16.mxu0 0
        %1223 = vmatpush1.bf16.msra.mxu0 0
        %1224 = vmatprep.subr.bf16.mxu0 0
        %1225 = vmatpush1.bf16.msra.mxu0 0
        %1226 = vmatprep.subr.bf16.mxu0 0
        %1227 = vmatpush1.bf16.msra.mxu0 0
        %1228 = vmatprep.subr.bf16.mxu0 0
        %1229 = vmatpush1.bf16.msra.mxu0 0
        %1230 = vmatprep.mubr.bf16.mxu0 0
        %1231 = vmatmul.mubr.bf16.gmra.mrb[0].mxu0 %v1077
        %v1232 = vpop.f32.mrb[0].mxu0
        %v1233 = vadd.f32 0.0, %v1232
        %v1234 = vpop.f32.mrb[0].mxu0
        %v1235 = vadd.f32 0.0, %v1234
        %v1236 = vpop.f32.mrb[0].mxu0
        %v1237 = vadd.f32 0.0, %v1236
        %v1238 = vpop.f32.mrb[0].mxu0
        %v1239 = vadd.f32 0.0, %v1238
        %1240 = vmatprep.mubr.bf16.mxu0 0
        %1241 = vmatmul.mubr.bf16.gmra.mrb[0].mxu0 %v1078
        %v1242 = vpop.f32.mrb[0].mxu0
        %v1243 = vadd.f32 0.0, %v1242
        %v1244 = vpop.f32.mrb[0].mxu0
        %v1245 = vadd.f32 0.0, %v1244
        %v1246 = vpop.f32.mrb[0].mxu0
        %v1247 = vadd.f32 0.0, %v1246
        %v1248 = vpop.f32.mrb[0].mxu0
        %v1249 = vadd.f32 0.0, %v1248
        %1250 = vmatprep.mubr.bf16.mxu0 0
        %1251 = vmatmul.mubr.bf16.gmra.mrb[0].mxu0 %v1079
        %v1252 = vpop.f32.mrb[0].mxu0
        %v1253 = vadd.f32 0.0, %v1252
        %v1254 = vpop.f32.mrb[0].mxu0
        %v1255 = vadd.f32 0.0, %v1254
        %v1256 = vpop.f32.mrb[0].mxu0
        %v1257 = vadd.f32 0.0, %v1256
        %v1258 = vpop.f32.mrb[0].mxu0
        %v1259 = vadd.f32 0.0, %v1258
        %1260 = vmatprep.mubr.bf16.mxu0 0
        %1261 = vmatmul.mubr.bf16.gmra.mrb[0].mxu0 %v1080
        %v1262 = vpop.f32.mrb[0].mxu0
        %v1263 = vadd.f32 0.0, %v1262
        %v1264 = vpop.f32.mrb[0].mxu0
        %v1265 = vadd.f32 0.0, %v1264
        %v1266 = vpop.f32.mrb[0].mxu0
        %v1267 = vadd.f32 0.0, %v1266
        %v1268 = vpop.f32.mrb[0].mxu0
        %v1269 = vadd.f32 0.0, %v1268
        %1270 = vmatprep.mubr.bf16.mxu0 0
        %1271 = vmatmul.mubr.bf16.gmra.mrb[0].mxu0 %v1081
        %v1272 = vpop.f32.mrb[0].mxu0
        %v1273 = vadd.f32 0.0, %v1272
        %v1274 = vpop.f32.mrb[0].mxu0
        %v1275 = vadd.f32 0.0, %v1274
        %v1276 = vpop.f32.mrb[0].mxu0
        %v1277 = vadd.f32 0.0, %v1276
        %v1278 = vpop.f32.mrb[0].mxu0
        %v1279 = vadd.f32 0.0, %v1278
        %1280 = vmatprep.mubr.bf16.mxu0 0
        %1281 = vmatmul.mubr.bf16.gmra.mrb[0].mxu0 %v1082
        %v1282 = vpop.f32.mrb[0].mxu0
        %v1283 = vadd.f32 0.0, %v1282
        %v1284 = vpop.f32.mrb[0].mxu0
        %v1285 = vadd.f32 0.0, %v1284
        %v1286 = vpop.f32.mrb[0].mxu0
        %v1287 = vadd.f32 0.0, %v1286
        %v1288 = vpop.f32.mrb[0].mxu0
        %v1289 = vadd.f32 0.0, %v1288
        %1290 = vmatprep.mubr.bf16.mxu0 0
        %1291 = vmatmul.mubr.bf16.gmra.mrb[0].mxu0 %v1083
        %v1292 = vpop.f32.mrb[0].mxu0
        %v1293 = vadd.f32 0.0, %v1292
        %v1294 = vpop.f32.mrb[0].mxu0
        %v1295 = vadd.f32 0.0, %v1294
        %v1296 = vpop.f32.mrb[0].mxu0
        %v1297 = vadd.f32 0.0, %v1296
        %v1298 = vpop.f32.mrb[0].mxu0
        %v1299 = vadd.f32 0.0, %v1298
        %1300 = vmatprep.mubr.bf16.mxu0 0
        %1301 = vmatmul.mubr.bf16.gmra.mrb[0].mxu0 %v1084
        %v1302 = vpop.f32.mrb[0].mxu0
        %v1303 = vadd.f32 0.0, %v1302
        %v1304 = vpop.f32.mrb[0].mxu0
        %v1305 = vadd.f32 0.0, %v1304
        %v1306 = vpop.f32.mrb[0].mxu0
        %v1307 = vadd.f32 0.0, %v1306
        %v1308 = vpop.f32.mrb[0].mxu0
        %v1309 = vadd.f32 0.0, %v1308
        %1310 = vdwg.mxu0
        %1311 = vmatprep.subr.bf16.mxu0 0
        %1312 = vmatpush1.bf16.msra.mxu0 %v933
        %1313 = vmatprep.subr.bf16.mxu0 0
        %1314 = vmatpush1.bf16.msra.mxu0 %v934
        %1315 = vmatprep.subr.bf16.mxu0 0
        %1316 = vmatpush1.bf16.msra.mxu0 %v935
        %1317 = vmatprep.subr.bf16.mxu0 0
        %1318 = vmatpush1.bf16.msra.mxu0 %v936
        %1319 = vmatprep.subr.bf16.mxu0 0
        %1320 = vmatpush1.bf16.msra.mxu0 %v937
        %1321 = vmatprep.subr.bf16.mxu0 0
        %1322 = vmatpush1.bf16.msra.mxu0 %v938
        %1323 = vmatprep.subr.bf16.mxu0 0
        %1324 = vmatpush1.bf16.msra.mxu0 %v939
        %1325 = vmatprep.subr.bf16.mxu0 0
        %1326 = vmatpush1.bf16.msra.mxu0 %v940
        %1327 = vmatprep.subr.bf16.mxu0 0
        %1328 = vmatpush1.bf16.msra.mxu0 0
        %1329 = vmatprep.subr.bf16.mxu0 0
        %1330 = vmatpush1.bf16.msra.mxu0 0
        %1331 = vmatprep.subr.bf16.mxu0 0
        %1332 = vmatpush1.bf16.msra.mxu0 0
        %1333 = vmatprep.subr.bf16.mxu0 0
        %1334 = vmatpush1.bf16.msra.mxu0 0
        %1335 = vmatprep.subr.bf16.mxu0 0
        %1336 = vmatpush1.bf16.msra.mxu0 0
        %1337 = vmatprep.subr.bf16.mxu0 0
        %1338 = vmatpush1.bf16.msra.mxu0 0
        %1339 = vmatprep.subr.bf16.mxu0 0
        %1340 = vmatpush1.bf16.msra.mxu0 0
        %1341 = vmatprep.subr.bf16.mxu0 0
        %1342 = vmatpush1.bf16.msra.mxu0 0
        %1343 = vmatprep.mubr.bf16.mxu0 0
        %1344 = vmatmul.mubr.bf16.gmra.mrb[0].mxu0 %v1077
        %v1345 = vpop.f32.mrb[0].mxu0
        %v1346 = vadd.f32 0.0, %v1345
        %v1347 = vpop.f32.mrb[0].mxu0
        %v1348 = vpop.f32.mrb[0].mxu0
        %v1349 = vadd.f32 0.0, %v1348
        %v1350 = vpop.f32.mrb[0].mxu0
        %1351 = vmatprep.mubr.bf16.mxu0 0
        %1352 = vmatmul.mubr.bf16.gmra.mrb[0].mxu0 %v1078
        %v1353 = vpop.f32.mrb[0].mxu0
        %v1354 = vadd.f32 0.0, %v1353
        %v1355 = vpop.f32.mrb[0].mxu0
        %v1356 = vpop.f32.mrb[0].mxu0
        %v1357 = vadd.f32 0.0, %v1356
        %v1358 = vpop.f32.mrb[0].mxu0
        %1359 = vmatprep.mubr.bf16.mxu0 0
        %1360 = vmatmul.mubr.bf16.gmra.mrb[0].mxu0 %v1079
        %v1361 = vpop.f32.mrb[0].mxu0
        %v1362 = vadd.f32 0.0, %v1361
        %v1363 = vpop.f32.mrb[0].mxu0
        %v1364 = vpop.f32.mrb[0].mxu0
        %v1365 = vadd.f32 0.0, %v1364
        %v1366 = vpop.f32.mrb[0].mxu0
        %1367 = vmatprep.mubr.bf16.mxu0 0
        %1368 = vmatmul.mubr.bf16.gmra.mrb[0].mxu0 %v1080
        %v1369 = vpop.f32.mrb[0].mxu0
        %v1370 = vadd.f32 0.0, %v1369
        %v1371 = vpop.f32.mrb[0].mxu0
        %v1372 = vpop.f32.mrb[0].mxu0
        %v1373 = vadd.f32 0.0, %v1372
        %v1374 = vpop.f32.mrb[0].mxu0
        %1375 = vmatprep.mubr.bf16.mxu0 0
        %1376 = vmatmul.mubr.bf16.gmra.mrb[0].mxu0 %v1081
        %v1377 = vpop.f32.mrb[0].mxu0
        %v1378 = vadd.f32 0.0, %v1377
        %v1379 = vpop.f32.mrb[0].mxu0
        %v1380 = vpop.f32.mrb[0].mxu0
        %v1381 = vadd.f32 0.0, %v1380
        %v1382 = vpop.f32.mrb[0].mxu0
        %1383 = vmatprep.mubr.bf16.mxu0 0
        %1384 = vmatmul.mubr.bf16.gmra.mrb[0].mxu0 %v1082
        %v1385 = vpop.f32.mrb[0].mxu0
        %v1386 = vadd.f32 0.0, %v1385
        %v1387 = vpop.f32.mrb[0].mxu0
        %v1388 = vpop.f32.mrb[0].mxu0
        %v1389 = vadd.f32 0.0, %v1388
        %v1390 = vpop.f32.mrb[0].mxu0
        %1391 = vmatprep.mubr.bf16.mxu0 0
        %1392 = vmatmul.mubr.bf16.gmra.mrb[0].mxu0 %v1083
        %v1393 = vpop.f32.mrb[0].mxu0
        %v1394 = vadd.f32 0.0, %v1393
        %v1395 = vpop.f32.mrb[0].mxu0
        %v1396 = vpop.f32.mrb[0].mxu0
        %v1397 = vadd.f32 0.0, %v1396
        %v1398 = vpop.f32.mrb[0].mxu0
        %1399 = vmatprep.mubr.bf16.mxu0 0
        %1400 = vmatmul.mubr.bf16.gmra.mrb[0].mxu0 %v1084
        %v1401 = vpop.f32.mrb[0].mxu0
        %v1402 = vadd.f32 0.0, %v1401
        %v1403 = vpop.f32.mrb[0].mxu0
        %v1404 = vpop.f32.mrb[0].mxu0
        %v1405 = vadd.f32 0.0, %v1404
        %v1406 = vpop.f32.mrb[0].mxu0
        %1407 = vdwg.mxu0
        %v1408 = vadd.f32 %v941, %v1120
        %v1409 = vadd.f32 %v942, %v1122
        %v1410 = vadd.f32 %v943, %v1233
        %v1411 = vadd.f32 %v944, %v1235
        %v1412 = vadd.f32 %v945, %v1346
        %v1413 = vadd.f32 %v946, %v1124
        %v1414 = vadd.f32 %v947, %v1126
        %v1415 = vadd.f32 %v948, %v1237
        %v1416 = vadd.f32 %v949, %v1239
        %v1417 = vadd.f32 %v950, %v1349
        %v1418 = vadd.f32 %v951, %v1130
        %v1419 = vadd.f32 %v952, %v1132
        %v1420 = vadd.f32 %v953, %v1243
        %v1421 = vadd.f32 %v954, %v1245
        %v1422 = vadd.f32 %v955, %v1354
        %v1423 = vadd.f32 %v956, %v1134
        %v1424 = vadd.f32 %v957, %v1136
        %v1425 = vadd.f32 %v958, %v1247
        %v1426 = vadd.f32 %v959, %v1249
        %v1427 = vadd.f32 %v960, %v1357
        %v1428 = vadd.f32 %v961, %v1140
        %v1429 = vadd.f32 %v962, %v1142
        %v1430 = vadd.f32 %v963, %v1253
        %v1431 = vadd.f32 %v964, %v1255
        %v1432 = vadd.f32 %v965, %v1362
        %v1433 = vadd.f32 %v966, %v1144
        %v1434 = vadd.f32 %v967, %v1146
        %v1435 = vadd.f32 %v968, %v1257
        %v1436 = vadd.f32 %v969, %v1259
        %v1437 = vadd.f32 %v970, %v1365
        %v1438 = vadd.f32 %v971, %v1150
        %v1439 = vadd.f32 %v972, %v1152
        %v1440 = vadd.f32 %v973, %v1263
        %v1441 = vadd.f32 %v974, %v1265
        %v1442 = vadd.f32 %v975, %v1370
        %v1443 = vadd.f32 %v976, %v1154
        %v1444 = vadd.f32 %v977, %v1156
        %v1445 = vadd.f32 %v978, %v1267
        %v1446 = vadd.f32 %v979, %v1269
        %v1447 = vadd.f32 %v980, %v1373
        %v1448 = vadd.f32 %v981, %v1160
        %v1449 = vadd.f32 %v982, %v1162
        %v1450 = vadd.f32 %v983, %v1273
        %v1451 = vadd.f32 %v984, %v1275
        %v1452 = vadd.f32 %v985, %v1378
        %v1453 = vadd.f32 %v986, %v1164
        %v1454 = vadd.f32 %v987, %v1166
        %v1455 = vadd.f32 %v988, %v1277
        %v1456 = vadd.f32 %v989, %v1279
        %v1457 = vadd.f32 %v990, %v1381
        %v1458 = vadd.f32 %v991, %v1170
        %v1459 = vadd.f32 %v992, %v1172
        %v1460 = vadd.f32 %v993, %v1283
        %v1461 = vadd.f32 %v994, %v1285
        %v1462 = vadd.f32 %v995, %v1386
        %v1463 = vadd.f32 %v996, %v1174
        %v1464 = vadd.f32 %v997, %v1176
        %v1465 = vadd.f32 %v998, %v1287
        %v1466 = vadd.f32 %v999, %v1289
        %v1467 = vadd.f32 %v1000, %v1389
        %v1468 = vadd.f32 %v1001, %v1180
        %v1469 = vadd.f32 %v1002, %v1182
        %v1470 = vadd.f32 %v1003, %v1293
        %v1471 = vadd.f32 %v1004, %v1295
        %v1472 = vadd.f32 %v1005, %v1394
        %v1473 = vadd.f32 %v1006, %v1184
        %v1474 = vadd.f32 %v1007, %v1186
        %v1475 = vadd.f32 %v1008, %v1297
        %v1476 = vadd.f32 %v1009, %v1299
        %v1477 = vadd.f32 %v1010, %v1397
        %v1478 = vadd.f32 %v1011, %v1190
        %v1479 = vadd.f32 %v1012, %v1192
        %v1480 = vadd.f32 %v1013, %v1303
        %v1481 = vadd.f32 %v1014, %v1305
        %v1482 = vadd.f32 %v1015, %v1402
        %v1483 = vadd.f32 %v1016, %v1194
        %v1484 = vadd.f32 %v1017, %v1196
        %v1485 = vadd.f32 %v1018, %v1307
        %v1486 = vadd.f32 %v1019, %v1309
        %v1487 = vadd.f32 %v1020, %v1405
        %1488 = vst [vmem:[%s205] sm:$0xff] %v1408
        %1489 = vst [vmem:[%s205 + $0x8] sm:$0xff] %v1409
        %1490 = vst [vmem:[%s205 + $0x10] sm:$0xff] %v1410
        %1491 = vst [vmem:[%s205 + $0x18] sm:$0xff] %v1411
        %1492 = vst [vmem:[%s205 + $0x20] sm:$0xff] %v1412
        %1493 = vst [vmem:[%s205 + $0x28] sm:$0xff] %v1413
        %1494 = vst [vmem:[%s205 + $0x30] sm:$0xff] %v1414
        %1495 = vst [vmem:[%s205 + $0x38] sm:$0xff] %v1415
        %1496 = vst [vmem:[%s205 + $0x40] sm:$0xff] %v1416
        %1497 = vst [vmem:[%s205 + $0x48] sm:$0xff] %v1417
        %1498 = vst [vmem:[%s205 + $0x50] sm:$0xff] %v1418
        %1499 = vst [vmem:[%s205 + $0x58] sm:$0xff] %v1419
        %1500 = vst [vmem:[%s205 + $0x60] sm:$0xff] %v1420
        %1501 = vst [vmem:[%s205 + $0x68] sm:$0xff] %v1421
        %1502 = vst [vmem:[%s205 + $0x70] sm:$0xff] %v1422
        %1503 = vst [vmem:[%s205 + $0x78] sm:$0xff] %v1423
        %1504 = vst [vmem:[%s205 + $0x80] sm:$0xff] %v1424
        %1505 = vst [vmem:[%s205 + $0x88] sm:$0xff] %v1425
        %1506 = vst [vmem:[%s205 + $0x90] sm:$0xff] %v1426
        %1507 = vst [vmem:[%s205 + $0x98] sm:$0xff] %v1427
        %1508 = vst [vmem:[%s205 + $0xa0] sm:$0xff] %v1428
        %1509 = vst [vmem:[%s205 + $0xa8] sm:$0xff] %v1429
        %1510 = vst [vmem:[%s205 + $0xb0] sm:$0xff] %v1430
        %1511 = vst [vmem:[%s205 + $0xb8] sm:$0xff] %v1431
        %1512 = vst [vmem:[%s205 + $0xc0] sm:$0xff] %v1432
        %1513 = vst [vmem:[%s205 + $0xc8] sm:$0xff] %v1433
        %1514 = vst [vmem:[%s205 + $0xd0] sm:$0xff] %v1434
        %1515 = vst [vmem:[%s205 + $0xd8] sm:$0xff] %v1435
        %1516 = vst [vmem:[%s205 + $0xe0] sm:$0xff] %v1436
        %1517 = vst [vmem:[%s205 + $0xe8] sm:$0xff] %v1437
        %1518 = vst [vmem:[%s205 + $0xf0] sm:$0xff] %v1438
        %1519 = vst [vmem:[%s205 + $0xf8] sm:$0xff] %v1439
        %1520 = vst [vmem:[%s205 + $0x100] sm:$0xff] %v1440
        %1521 = vst [vmem:[%s205 + $0x108] sm:$0xff] %v1441
        %1522 = vst [vmem:[%s205 + $0x110] sm:$0xff] %v1442
        %1523 = vst [vmem:[%s205 + $0x118] sm:$0xff] %v1443
        %1524 = vst [vmem:[%s205 + $0x120] sm:$0xff] %v1444
        %1525 = vst [vmem:[%s205 + $0x128] sm:$0xff] %v1445
        %1526 = vst [vmem:[%s205 + $0x130] sm:$0xff] %v1446
        %1527 = vst [vmem:[%s205 + $0x138] sm:$0xff] %v1447
        %1528 = vst [vmem:[%s205 + $0x140] sm:$0xff] %v1448
        %1529 = vst [vmem:[%s205 + $0x148] sm:$0xff] %v1449
        %1530 = vst [vmem:[%s205 + $0x150] sm:$0xff] %v1450
        %1531 = vst [vmem:[%s205 + $0x158] sm:$0xff] %v1451
        %1532 = vst [vmem:[%s205 + $0x160] sm:$0xff] %v1452
        %1533 = vst [vmem:[%s205 + $0x168] sm:$0xff] %v1453
        %1534 = vst [vmem:[%s205 + $0x170] sm:$0xff] %v1454
        %1535 = vst [vmem:[%s205 + $0x178] sm:$0xff] %v1455
        %1536 = vst [vmem:[%s205 + $0x180] sm:$0xff] %v1456
        %1537 = vst [vmem:[%s205 + $0x188] sm:$0xff] %v1457
        %1538 = vst [vmem:[%s205 + $0x190] sm:$0xff] %v1458
        %1539 = vst [vmem:[%s205 + $0x198] sm:$0xff] %v1459
        %1540 = vst [vmem:[%s205 + $0x1a0] sm:$0xff] %v1460
        %1541 = vst [vmem:[%s205 + $0x1a8] sm:$0xff] %v1461
        %1542 = vst [vmem:[%s205 + $0x1b0] sm:$0xff] %v1462
        %1543 = vst [vmem:[%s205 + $0x1b8] sm:$0xff] %v1463
        %1544 = vst [vmem:[%s205 + $0x1c0] sm:$0xff] %v1464
        %1545 = vst [vmem:[%s205 + $0x1c8] sm:$0xff] %v1465
        %1546 = vst [vmem:[%s205 + $0x1d0] sm:$0xff] %v1466
        %1547 = vst [vmem:[%s205 + $0x1d8] sm:$0xff] %v1467
        %1548 = vst [vmem:[%s205 + $0x1e0] sm:$0xff] %v1468
        %1549 = vst [vmem:[%s205 + $0x1e8] sm:$0xff] %v1469
        %1550 = vst [vmem:[%s205 + $0x1f0] sm:$0xff] %v1470
        %1551 = vst [vmem:[%s205 + $0x1f8] sm:$0xff] %v1471
        %1552 = vst [vmem:[%s205 + $0x200] sm:$0xff] %v1472
        %1553 = vst [vmem:[%s205 + $0x208] sm:$0xff] %v1473
        %1554 = vst [vmem:[%s205 + $0x210] sm:$0xff] %v1474
        %1555 = vst [vmem:[%s205 + $0x218] sm:$0xff] %v1475
        %1556 = vst [vmem:[%s205 + $0x220] sm:$0xff] %v1476
        %1557 = vst [vmem:[%s205 + $0x228] sm:$0xff] %v1477
        %1558 = vst [vmem:[%s205 + $0x230] sm:$0xff] %v1478
        %1559 = vst [vmem:[%s205 + $0x238] sm:$0xff] %v1479
        %1560 = vst [vmem:[%s205 + $0x240] sm:$0xff] %v1480
        %1561 = vst [vmem:[%s205 + $0x248] sm:$0xff] %v1481
        %1562 = vst [vmem:[%s205 + $0x250] sm:$0xff] %v1482
        %1563 = vst [vmem:[%s205 + $0x258] sm:$0xff] %v1483
        %1564 = vst [vmem:[%s205 + $0x260] sm:$0xff] %v1484
        %1565 = vst [vmem:[%s205 + $0x268] sm:$0xff] %v1485
        %1566 = vst [vmem:[%s205 + $0x270] sm:$0xff] %v1486
        %1567 = vst [vmem:[%s205 + $0x278] sm:$0xff] %v1487
        %s1568 = sand.u32 %s104, 1
        %s1569 = scalar_lea.sflag [#allocation3], %s1568
        %s1570 = sand.u32 %s104, 1
        %s1571 = smul.addr %s1570, 640
        %s1572 = scalar_lea.vmem [#allocation2], %s1571
        // Predicated region
        $region33: #{tpu_custom_call.1} parent=27 // pred_check
          %p1573 = pneg %p114
        $region34: #{tpu_custom_call.1} parent=27 // pred_check_branch
          %1575 = sbr.rel (%p1573) target = $region36
        $region35: #{tpu_custom_call.1} parent=27 // pred_region
          %s1577 = ssub.s32 10240, 10240
          %1578 = vsyncadd %s1569, %s1577
          %s1579 = smul.addr %s20, 80
          %s1580 = smul.addr %s1579, 128
          %s1581 = scalar_lea.hbm %s2, %s1580
          %s1582 = sshll.u32 %s1572, 4
          %s1583 = int_to_ptr.vmem [resolvable:$true] %s1582
          %1588 = dma.vmem_to_hbm [thread:$0]  %s1583, 10240, %s1581, %s1569, 640, 640, 40
        $region36: #{tpu_custom_call.1} parent=27 // pred_fallthru
          _
      $region28: #{tpu_custom_call.1} parent=5 // pred_fallthru
        _
      %p1589 = scmp.le.s32.totalorder 2, %s11
      // Predicated region
      $region37: #{tpu_custom_call.1} parent=5 // pred_check
        %p1590 = pneg %p1589
      $region38: #{tpu_custom_call.1} parent=5 // pred_check_branch
        %1592 = sbr.rel (%p1590) target = $region40
      $region39: #{tpu_custom_call.1} parent=5 // pred_region
        %s1593 = ssub.s32 %s11, 2
        // Predicated region
        $region41: #{tpu_custom_call.1} parent=39 // pred_check
          %p1594 = pneg %p120
        $region42: #{tpu_custom_call.1} parent=39 // pred_check_branch
          %1596 = sbr.rel (%p1594) target = $region44
        $region43: #{tpu_custom_call.1} parent=39 // pred_region
          %s1597 = sand.u32 %s105, 1
          %s1598 = scalar_lea.sflag [#allocation3], %s1597
          %s1599 = sand.u32 %s105, 1
          %s1600 = smul.addr %s1599, 640
          %s1601 = scalar_lea.vmem [#allocation2], %s1600
          %1602 = dma.done %s1598, 10240
        $region44: #{tpu_custom_call.1} parent=39 // pred_fallthru
          _
      $region40: #{tpu_custom_call.1} parent=5 // pred_fallthru
        _
    $region6: #{tpu_custom_call.1} parent=1 // loop_footer
      %s15 = sadd.s32 1, %s11
    $region7: #{tpu_custom_call.1} parent=1 // loop_footer_branch
      %10 = sbr.rel target = $region3
    $region8: #{tpu_custom_call.1} parent=1 // loop_exit
      _
    %1603 = vsyncpa [#allocation3], 1
    %s1604 = scalar_lea.sflag [#allocation3], 1
    %1605 = vsyncpa %s1604, 1

</llo_original>
